<compile_context>
chip_gen: v7x
topology: tpu7x:2x2x1
jax: 0.10.0
libtpu: 0.0.40
codegen_flags: <defaults>
</compile_context>

<pallas_src>
import numpy as np
import jax
import jax.numpy as jnp
from jax import lax
from jax.experimental import pallas as pl
from jax.experimental.pallas import tpu as pltpu

HIDDEN = 32
INPUT_DIM = 1
OUTPUT_DIM = 1
NUM_LAYERS = 2

_STATIC_UNROLL_MAX_T = 16   # fully unroll the wavefront loop up to this many steps
_FORI_UNROLL = 8            # partial unroll factor for the large-T fori_loop path


def gru_kernel(x_ref, w_rec_ref, w_ih0_ref, b_gi0_ref, w_ih1_ref, b_gi1_ref,
               b_hn_ref, gi1_init_ref, fc_w_ref, fc_b_ref, out_ref):
    H = HIDDEN
    B, T, I = x_ref.shape
    G2 = 2 * H          # 64  : combined hidden width [h0 | h1]
    G6 = 6 * H          # 192 : combined gate width   [r0 r1 z0 z1 n0 n1]

    w_rec = w_rec_ref[...]       # (2H, 6H) block-diag recurrent weights, both layers
    w_ih0 = w_ih0_ref[...]       # (I, 6H)  layer-0 input weights (layer-1 cols zero)
    b_gi0 = b_gi0_ref[...]       # (1, 6H)  [b_ir0+b_hr0, 0, b_iz0+b_hz0, 0, b_in0, 0]
    w_ih1 = w_ih1_ref[...]       # (2H, 6H) layer-1 input weights (h0 rows only, l0 cols zero)
    b_gi1 = b_gi1_ref[...]       # (1, 6H)  [0, b_ir1+b_hr1, 0, b_iz1+b_hz1, 0, b_in1]
    b_hn = b_hn_ref[...]         # (1, 2H)  [b_hn0 | b_hn1]

    def gi0_at(t):
        # Layer-0 input projection for timestep t.  For I == 1 this is a pure VPU
        # broadcast multiply (one vreg), recomputed per step so nothing T-sized
        # stays live across the loop.
        x_t = x_ref[:, pl.ds(t, 1), :].reshape(B, I).astype(jnp.float32)
        if I == 1:
            return x_t * w_ih0 + b_gi0
        return jnp.dot(x_t, w_ih0, preferred_element_type=jnp.float32) + b_gi0

    def wave_step(gi0, carry):
        # carry: h01 = [h0[s-1] | h1[s-2]]  (B, 2H)
        #        gi1_prev = x-projection of layer 1 for timestep s-1 (B, 6H)
        h01, gi1_prev = carry
        # Single fused recurrent matmul for BOTH layers (block-diagonal RHS):
        # one 192-wide MXU pass; depends only on the carry.
        gh = jnp.dot(h01, w_rec, preferred_element_type=jnp.float32)   # (B, 6H)
        gi = gi0 + gi1_prev                                            # (B, 6H)

        # PyTorch GRU cell, both layers at once in the combined layout:
        #   r = sigmoid(gi_r + gh_r); z = sigmoid(gi_z + gh_z)
        #   n = tanh(gi_n + r * (gh_n + b_hn)); h' = (1 - z) * n + z * h_prev
        rz = jax.nn.sigmoid(gi[:, :2 * G2] + gh[:, :2 * G2])   # one 128-lane EUP call
        r = rz[:, :G2]
        z = rz[:, G2:]
        n = jnp.tanh(gi[:, 2 * G2:] + r * (gh[:, 2 * G2:] + b_hn))
        h01_new = (1.0 - z) * n + z * h01                       # = [h0[s] | h1[s-1]]

        # Layer-1 input projection for the NEXT wavefront step (consumed one step
        # later, so it sits off this step's critical path).
        gi1_next = jnp.dot(h01_new, w_ih1, preferred_element_type=jnp.float32) + b_gi1
        return h01_new, gi1_next

    # Initial carry: zero hidden state for both layers; gi1_init is constructed so
    # that the "phantom" layer-1 update of wavefront step 0 yields exactly 0
    # (i.e. h1[-1] = 0, matching PyTorch's zero initial hidden state).
    carry = (jnp.zeros((B, G2), jnp.float32),
             jnp.broadcast_to(gi1_init_ref[...], (B, G6)))

    if T <= _STATIC_UNROLL_MAX_T:
        for t in range(T):                         # static unroll for short sequences
            carry = wave_step(gi0_at(t), carry)
    else:
        def body(t, c):
            return wave_step(gi0_at(t), c)
        carry = lax.fori_loop(0, T, body, carry, unroll=_FORI_UNROLL)

    # Epilogue: one more wavefront step retires layer 1 at timestep T-1.  The
    # layer-0 half of the result is discarded, so a zero gi0 is fine.
    h01_final, _ = wave_step(jnp.zeros((B, G6), jnp.float32), carry)
    h1_last = h01_final[:, H:G2]                   # layer-1 hidden at t = T-1

    # fc head on the last timestep of the top layer.
    out_ref[...] = (jnp.dot(h1_last, fc_w_ref[...], preferred_element_type=jnp.float32)
                    + fc_b_ref[...])


def _combined_params(params, H):
    """Build the combined-layout weights/biases used by the kernel.

    Gate layout along the 6H output axis: [r0 r1 z0 z1 n0 n1] (each H wide).
    """
    f32 = jnp.float32
    w_ih0 = jnp.asarray(params["w_ih0"], f32)      # (3H, I)
    w_hh0 = jnp.asarray(params["w_hh0"], f32)      # (3H, H)
    w_ih1 = jnp.asarray(params["w_ih1"], f32)      # (3H, H)
    w_hh1 = jnp.asarray(params["w_hh1"], f32)      # (3H, H)
    b_ih0 = jnp.asarray(params["b_ih0"], f32)
    b_hh0 = jnp.asarray(params["b_hh0"], f32)
    b_ih1 = jnp.asarray(params["b_ih1"], f32)
    b_hh1 = jnp.asarray(params["b_hh1"], f32)
    I = w_ih0.shape[1]

    def blocks(w):   # (3H, X) -> transposed (X, H) blocks for r, z, n
        return w[0:H].T, w[H:2 * H].T, w[2 * H:3 * H].T

    r0h, z0h, n0h = blocks(w_hh0)    # (H, H)
    r1h, z1h, n1h = blocks(w_hh1)    # (H, H)
    r0i, z0i, n0i = blocks(w_ih0)    # (I, H)
    r1i, z1i, n1i = blocks(w_ih1)    # (H, H)

    z_hh = jnp.zeros((H, H), f32)
    # Block-diagonal recurrent matrix: rows 0:H = h0 contributions, rows H:2H = h1.
    w_rec = jnp.concatenate([
        jnp.concatenate([r0h, z_hh, z0h, z_hh, n0h, z_hh], axis=1),
        jnp.concatenate([z_hh, r1h, z_hh, z1h, z_hh, n1h], axis=1)],
        axis=0)                                                   # (2H, 6H)

    z_ih = jnp.zeros((I, H), f32)
    w_ih0_c = jnp.concatenate([r0i, z_ih, z0i, z_ih, n0i, z_ih], axis=1)   # (I, 6H)

    # Layer-1 input projection consumes only the h0 half of the combined state.
    w_ih1_c = jnp.concatenate([
        jnp.concatenate([z_hh, r1i, z_hh, z1i, z_hh, n1i], axis=1),
        jnp.zeros((H, 6 * H), f32)], axis=0)                      # (2H, 6H)

    zH = jnp.zeros((H,), f32)
    b_gi0 = jnp.concatenate([b_ih0[:H] + b_hh0[:H], zH,
                             b_ih0[H:2 * H] + b_hh0[H:2 * H], zH,
                             b_ih0[2 * H:], zH]).reshape(1, 6 * H)
    b_gi1 = jnp.concatenate([zH, b_ih1[:H] + b_hh1[:H],
                             zH, b_ih1[H:2 * H] + b_hh1[H:2 * H],
                             zH, b_ih1[2 * H:]]).reshape(1, 6 * H)
    b_hn = jnp.concatenate([b_hh0[2 * H:], b_hh1[2 * H:]]).reshape(1, 2 * H)

    # Initial pending layer-1 gate input: with zero gh this gives r1 = z1 = 0.5 and
    # n1 = tanh(-0.5*b_hn1 + 0.5*b_hn1) = 0, hence h1[-1] = 0 exactly.
    gi1_init = jnp.concatenate([zH, zH, zH, zH, zH,
                                -0.5 * b_hh1[2 * H:]]).reshape(1, 6 * H)
    return w_rec, w_ih0_c, b_gi0, w_ih1_c, b_gi1, b_hn, gi1_init


def gru_forward(x, params):
    B, T, I = x.shape
    H = HIDDEN
    O = params["fc_w"].shape[0]

    w_rec, w_ih0_c, b_gi0, w_ih1_c, b_gi1, b_hn, gi1_init = _combined_params(params, H)
    fc_w_T = jnp.asarray(params["fc_w"], jnp.float32).T           # (H, O)
    fc_b = jnp.asarray(params["fc_b"], jnp.float32).reshape(1, O)

    n_in = 10
    vmem = pl.BlockSpec(memory_space=pltpu.MemorySpace.VMEM)

    return pl.pallas_call(
        gru_kernel,
        out_shape=jax.ShapeDtypeStruct((B, O), jnp.float32),
        in_specs=[vmem] * n_in,
        out_specs=pl.BlockSpec(memory_space=pltpu.MemorySpace.VMEM),
    )(x.astype(jnp.float32),
      w_rec, w_ih0_c, b_gi0, w_ih1_c, b_gi1, b_hn, gi1_init,
      fc_w_T, fc_b)


def init_params(key, input_dim=INPUT_DIM, hidden_dim=HIDDEN, output_dim=OUTPUT_DIM):
    """PyTorch-layout params with uniform(-1/sqrt(H), 1/sqrt(H)) init."""
    H = hidden_dim
    k = 1.0 / np.sqrt(H)
    keys = jax.random.split(key, 10)
    u = lambda kk, shape: jax.random.uniform(kk, shape, jnp.float32, -k, k)
    return {
        # layer 0 (input_size = input_dim)
        "w_ih0": u(keys[0], (3 * H, input_dim)),
        "w_hh0": u(keys[1], (3 * H, H)),
        "b_ih0": u(keys[2], (3 * H,)),
        "b_hh0": u(keys[3], (3 * H,)),
        # layer 1 (input_size = hidden_dim)
        "w_ih1": u(keys[4], (3 * H, H)),
        "w_hh1": u(keys[5], (3 * H, H)),
        "b_ih1": u(keys[6], (3 * H,)),
        "b_hh1": u(keys[7], (3 * H,)),
        # fc: Linear(hidden_dim, output_dim)
        "fc_w": u(keys[8], (output_dim, H)),
        "fc_b": u(keys[9], (output_dim,)),
    }


def gru_reference(x, params):
    """Pure-JAX reference using raw PyTorch-layout params (validates the combined
    layout, bias folding and the wavefront pipelining)."""
    B, T, I = x.shape
    H = HIDDEN

    def cell(x_t, h, w_ih, w_hh, b_ih, b_hh):
        gi = x_t @ w_ih.T + b_ih
        gh = h @ w_hh.T + b_hh
        r = jax.nn.sigmoid(gi[:, :H] + gh[:, :H])
        z = jax.nn.sigmoid(gi[:, H:2 * H] + gh[:, H:2 * H])
        n = jnp.tanh(gi[:, 2 * H:] + r * gh[:, 2 * H:])
        return (1.0 - z) * n + z * h

    h0 = jnp.zeros((B, H), jnp.float32)
    h1 = jnp.zeros((B, H), jnp.float32)
    for t in range(T):
        h0 = cell(x[:, t, :], h0, params["w_ih0"], params["w_hh0"],
                  params["b_ih0"], params["b_hh0"])
        h1 = cell(h0, h1, params["w_ih1"], params["w_hh1"],
                  params["b_ih1"], params["b_hh1"])
    return h1 @ params["fc_w"].T + params["fc_b"]


if __name__ == "__main__":
    key = jax.random.PRNGKey(0)
    k_param, k_x = jax.random.split(key)

    B, T = 2, 8                                   # batch=2, seq=8, input_dim=1
    params = init_params(k_param)
    x = jax.random.normal(k_x, (B, T, INPUT_DIM), jnp.float32)

    out = jax.block_until_ready(gru_forward(x, params))

    ref = gru_reference(x, params)
    np.testing.assert_allclose(np.asarray(out), np.asarray(ref),
                               rtol=1e-5, atol=1e-5)
    assert out.shape == (B, OUTPUT_DIM)
    print("KERNEL_OK")
</pallas_src>

<mosaic_0001>
module attributes {stable_mosaic.version = 11 : i64} {
  func.func @gru_kernel(%arg0: memref<2x8x1xf32, #tpu.memory_space<vmem>>, %arg1: memref<64x192xf32, #tpu.memory_space<vmem>>, %arg2: memref<1x192xf32, #tpu.memory_space<vmem>>, %arg3: memref<1x192xf32, #tpu.memory_space<vmem>>, %arg4: memref<64x192xf32, #tpu.memory_space<vmem>>, %arg5: memref<1x192xf32, #tpu.memory_space<vmem>>, %arg6: memref<1x64xf32, #tpu.memory_space<vmem>>, %arg7: memref<1x192xf32, #tpu.memory_space<vmem>>, %arg8: memref<32x1xf32, #tpu.memory_space<vmem>>, %arg9: memref<1x1xf32, #tpu.memory_space<vmem>>, %arg10: memref<2x1xf32, #tpu.memory_space<vmem>>) attributes {dimension_semantics = [], scalar_prefetch = 0 : i64, scratch_operands = 0 : i64, tpu.core_type = #tpu.core_type<tc>} {
    %c0 = arith.constant 0 : index
    %c0_0 = arith.constant 0 : index
    %0 = vector.load %arg1[%c0, %c0_0] : memref<64x192xf32, #tpu.memory_space<vmem>>, vector<64x192xf32>
    %c0_1 = arith.constant 0 : index
    %c0_2 = arith.constant 0 : index
    %1 = vector.load %arg2[%c0_1, %c0_2] : memref<1x192xf32, #tpu.memory_space<vmem>>, vector<1x192xf32>
    %c0_3 = arith.constant 0 : index
    %c0_4 = arith.constant 0 : index
    %2 = vector.load %arg3[%c0_3, %c0_4] : memref<1x192xf32, #tpu.memory_space<vmem>>, vector<1x192xf32>
    %c0_5 = arith.constant 0 : index
    %c0_6 = arith.constant 0 : index
    %3 = vector.load %arg4[%c0_5, %c0_6] : memref<64x192xf32, #tpu.memory_space<vmem>>, vector<64x192xf32>
    %c0_7 = arith.constant 0 : index
    %c0_8 = arith.constant 0 : index
    %4 = vector.load %arg5[%c0_7, %c0_8] : memref<1x192xf32, #tpu.memory_space<vmem>>, vector<1x192xf32>
    %c0_9 = arith.constant 0 : index
    %c0_10 = arith.constant 0 : index
    %5 = vector.load %arg6[%c0_9, %c0_10] : memref<1x64xf32, #tpu.memory_space<vmem>>, vector<1x64xf32>
    %cst = arith.constant 0.000000e+00 : f32
    %6 = vector.broadcast %cst : f32 to vector<2x64xf32>
    %c0_11 = arith.constant 0 : index
    %c0_12 = arith.constant 0 : index
    %7 = vector.load %arg7[%c0_11, %c0_12] : memref<1x192xf32, #tpu.memory_space<vmem>>, vector<1x192xf32>
    %8 = vector.shape_cast %7 : vector<1x192xf32> to vector<1x192xf32>
    %9 = vector.broadcast %8 : vector<1x192xf32> to vector<2x192xf32>
    %c0_13 = arith.constant 0 : index
    %c0_14 = arith.constant 0 : index
    %c0_15 = arith.constant 0 : index
    %10 = vector.load %arg0[%c0_13, %c0_14, %c0_15] : memref<2x8x1xf32, #tpu.memory_space<vmem>>, vector<2x1x1xf32>
    %11 = vector.shape_cast %10 : vector<2x1x1xf32> to vector<2x1xf32>
    %12 = vector.broadcast %11 : vector<2x1xf32> to vector<2x192xf32>
    %13 = vector.broadcast %1 : vector<1x192xf32> to vector<2x192xf32>
    %14 = arith.mulf %12, %13 : vector<2x192xf32>
    %15 = vector.broadcast %2 : vector<1x192xf32> to vector<2x192xf32>
    %16 = arith.addf %14, %15 : vector<2x192xf32>
    %cst_16 = arith.constant dense<0.000000e+00> : vector<2x192xf32>
    %17 = tpu.matmul %6, %0, %cst_16 {dimension_numbers = #tpu.dot_dimension_numbers<[1], [0], [0], [1], [0, 0, 1, 1], [], []>} : vector<2x64xf32>, vector<64x192xf32>, vector<2x192xf32> -> vector<2x192xf32>
    %18 = arith.addf %16, %9 : vector<2x192xf32>
    %19 = vector.extract_strided_slice %18 {offsets = [0, 0], sizes = [2, 128], strides = [1, 1]} : vector<2x192xf32> to vector<2x128xf32>
    %20 = vector.extract_strided_slice %17 {offsets = [0, 0], sizes = [2, 128], strides = [1, 1]} : vector<2x192xf32> to vector<2x128xf32>
    %21 = arith.addf %19, %20 : vector<2x128xf32>
    %22 = arith.negf %21 : vector<2x128xf32>
    %23 = math.exp %22 : vector<2x128xf32>
    %cst_17 = arith.constant 1.000000e+00 : f32
    %24 = vector.broadcast %cst_17 : f32 to vector<2x128xf32>
    %25 = arith.addf %24, %23 : vector<2x128xf32>
    %26 = arith.divf %24, %25 : vector<2x128xf32>
    %27 = vector.extract_strided_slice %26 {offsets = [0, 0], sizes = [2, 64], strides = [1, 1]} : vector<2x128xf32> to vector<2x64xf32>
    %28 = vector.extract_strided_slice %26 {offsets = [0, 64], sizes = [2, 64], strides = [1, 1]} : vector<2x128xf32> to vector<2x64xf32>
    %29 = vector.extract_strided_slice %18 {offsets = [0, 128], sizes = [2, 64], strides = [1, 1]} : vector<2x192xf32> to vector<2x64xf32>
    %30 = vector.extract_strided_slice %17 {offsets = [0, 128], sizes = [2, 64], strides = [1, 1]} : vector<2x192xf32> to vector<2x64xf32>
    %31 = vector.broadcast %5 : vector<1x64xf32> to vector<2x64xf32>
    %32 = arith.addf %30, %31 : vector<2x64xf32>
    %33 = arith.mulf %27, %32 : vector<2x64xf32>
    %34 = arith.addf %29, %33 : vector<2x64xf32>
    %35 = math.tanh %34 : vector<2x64xf32>
    %cst_18 = arith.constant 1.000000e+00 : f32
    %36 = vector.broadcast %cst_18 : f32 to vector<2x64xf32>
    %37 = arith.subf %36, %28 : vector<2x64xf32>
    %38 = arith.mulf %37, %35 : vector<2x64xf32>
    %39 = arith.mulf %28, %6 : vector<2x64xf32>
    %40 = arith.addf %38, %39 : vector<2x64xf32>
    %cst_19 = arith.constant dense<0.000000e+00> : vector<2x192xf32>
    %41 = tpu.matmul %40, %3, %cst_19 {dimension_numbers = #tpu.dot_dimension_numbers<[1], [0], [0], [1], [0, 0, 1, 1], [], []>} : vector<2x64xf32>, vector<64x192xf32>, vector<2x192xf32> -> vector<2x192xf32>
    %42 = vector.broadcast %4 : vector<1x192xf32> to vector<2x192xf32>
    %43 = arith.addf %41, %42 : vector<2x192xf32>
    %c0_20 = arith.constant 0 : index
    %c1 = arith.constant 1 : index
    %c0_21 = arith.constant 0 : index
    %44 = vector.load %arg0[%c0_20, %c1, %c0_21] : memref<2x8x1xf32, #tpu.memory_space<vmem>>, vector<2x1x1xf32>
    %45 = vector.shape_cast %44 : vector<2x1x1xf32> to vector<2x1xf32>
    %46 = vector.broadcast %45 : vector<2x1xf32> to vector<2x192xf32>
    %47 = vector.broadcast %1 : vector<1x192xf32> to vector<2x192xf32>
    %48 = arith.mulf %46, %47 : vector<2x192xf32>
    %49 = vector.broadcast %2 : vector<1x192xf32> to vector<2x192xf32>
    %50 = arith.addf %48, %49 : vector<2x192xf32>
    %cst_22 = arith.constant dense<0.000000e+00> : vector<2x192xf32>
    %51 = tpu.matmul %40, %0, %cst_22 {dimension_numbers = #tpu.dot_dimension_numbers<[1], [0], [0], [1], [0, 0, 1, 1], [], []>} : vector<2x64xf32>, vector<64x192xf32>, vector<2x192xf32> -> vector<2x192xf32>
    %52 = arith.addf %50, %43 : vector<2x192xf32>
    %53 = vector.extract_strided_slice %52 {offsets = [0, 0], sizes = [2, 128], strides = [1, 1]} : vector<2x192xf32> to vector<2x128xf32>
    %54 = vector.extract_strided_slice %51 {offsets = [0, 0], sizes = [2, 128], strides = [1, 1]} : vector<2x192xf32> to vector<2x128xf32>
    %55 = arith.addf %53, %54 : vector<2x128xf32>
    %56 = arith.negf %55 : vector<2x128xf32>
    %57 = math.exp %56 : vector<2x128xf32>
    %cst_23 = arith.constant 1.000000e+00 : f32
    %58 = vector.broadcast %cst_23 : f32 to vector<2x128xf32>
    %59 = arith.addf %58, %57 : vector<2x128xf32>
    %60 = arith.divf %58, %59 : vector<2x128xf32>
    %61 = vector.extract_strided_slice %60 {offsets = [0, 0], sizes = [2, 64], strides = [1, 1]} : vector<2x128xf32> to vector<2x64xf32>
    %62 = vector.extract_strided_slice %60 {offsets = [0, 64], sizes = [2, 64], strides = [1, 1]} : vector<2x128xf32> to vector<2x64xf32>
    %63 = vector.extract_strided_slice %52 {offsets = [0, 128], sizes = [2, 64], strides = [1, 1]} : vector<2x192xf32> to vector<2x64xf32>
    %64 = vector.extract_strided_slice %51 {offsets = [0, 128], sizes = [2, 64], strides = [1, 1]} : vector<2x192xf32> to vector<2x64xf32>
    %65 = vector.broadcast %5 : vector<1x64xf32> to vector<2x64xf32>
    %66 = arith.addf %64, %65 : vector<2x64xf32>
    %67 = arith.mulf %61, %66 : vector<2x64xf32>
    %68 = arith.addf %63, %67 : vector<2x64xf32>
    %69 = math.tanh %68 : vector<2x64xf32>
    %cst_24 = arith.constant 1.000000e+00 : f32
    %70 = vector.broadcast %cst_24 : f32 to vector<2x64xf32>
    %71 = arith.subf %70, %62 : vector<2x64xf32>
    %72 = arith.mulf %71, %69 : vector<2x64xf32>
    %73 = arith.mulf %62, %40 : vector<2x64xf32>
    %74 = arith.addf %72, %73 : vector<2x64xf32>
    %cst_25 = arith.constant dense<0.000000e+00> : vector<2x192xf32>
    %75 = tpu.matmul %74, %3, %cst_25 {dimension_numbers = #tpu.dot_dimension_numbers<[1], [0], [0], [1], [0, 0, 1, 1], [], []>} : vector<2x64xf32>, vector<64x192xf32>, vector<2x192xf32> -> vector<2x192xf32>
    %76 = vector.broadcast %4 : vector<1x192xf32> to vector<2x192xf32>
    %77 = arith.addf %75, %76 : vector<2x192xf32>
    %c0_26 = arith.constant 0 : index
    %c2 = arith.constant 2 : index
    %c0_27 = arith.constant 0 : index
    %78 = vector.load %arg0[%c0_26, %c2, %c0_27] : memref<2x8x1xf32, #tpu.memory_space<vmem>>, vector<2x1x1xf32>
    %79 = vector.shape_cast %78 : vector<2x1x1xf32> to vector<2x1xf32>
    %80 = vector.broadcast %79 : vector<2x1xf32> to vector<2x192xf32>
    %81 = vector.broadcast %1 : vector<1x192xf32> to vector<2x192xf32>
    %82 = arith.mulf %80, %81 : vector<2x192xf32>
    %83 = vector.broadcast %2 : vector<1x192xf32> to vector<2x192xf32>
    %84 = arith.addf %82, %83 : vector<2x192xf32>
    %cst_28 = arith.constant dense<0.000000e+00> : vector<2x192xf32>
    %85 = tpu.matmul %74, %0, %cst_28 {dimension_numbers = #tpu.dot_dimension_numbers<[1], [0], [0], [1], [0, 0, 1, 1], [], []>} : vector<2x64xf32>, vector<64x192xf32>, vector<2x192xf32> -> vector<2x192xf32>
    %86 = arith.addf %84, %77 : vector<2x192xf32>
    %87 = vector.extract_strided_slice %86 {offsets = [0, 0], sizes = [2, 128], strides = [1, 1]} : vector<2x192xf32> to vector<2x128xf32>
    %88 = vector.extract_strided_slice %85 {offsets = [0, 0], sizes = [2, 128], strides = [1, 1]} : vector<2x192xf32> to vector<2x128xf32>
    %89 = arith.addf %87, %88 : vector<2x128xf32>
    %90 = arith.negf %89 : vector<2x128xf32>
    %91 = math.exp %90 : vector<2x128xf32>
    %cst_29 = arith.constant 1.000000e+00 : f32
    %92 = vector.broadcast %cst_29 : f32 to vector<2x128xf32>
    %93 = arith.addf %92, %91 : vector<2x128xf32>
    %94 = arith.divf %92, %93 : vector<2x128xf32>
    %95 = vector.extract_strided_slice %94 {offsets = [0, 0], sizes = [2, 64], strides = [1, 1]} : vector<2x128xf32> to vector<2x64xf32>
    %96 = vector.extract_strided_slice %94 {offsets = [0, 64], sizes = [2, 64], strides = [1, 1]} : vector<2x128xf32> to vector<2x64xf32>
    %97 = vector.extract_strided_slice %86 {offsets = [0, 128], sizes = [2, 64], strides = [1, 1]} : vector<2x192xf32> to vector<2x64xf32>
    %98 = vector.extract_strided_slice %85 {offsets = [0, 128], sizes = [2, 64], strides = [1, 1]} : vector<2x192xf32> to vector<2x64xf32>
    %99 = vector.broadcast %5 : vector<1x64xf32> to vector<2x64xf32>
    %100 = arith.addf %98, %99 : vector<2x64xf32>
    %101 = arith.mulf %95, %100 : vector<2x64xf32>
    %102 = arith.addf %97, %101 : vector<2x64xf32>
    %103 = math.tanh %102 : vector<2x64xf32>
    %cst_30 = arith.constant 1.000000e+00 : f32
    %104 = vector.broadcast %cst_30 : f32 to vector<2x64xf32>
    %105 = arith.subf %104, %96 : vector<2x64xf32>
    %106 = arith.mulf %105, %103 : vector<2x64xf32>
    %107 = arith.mulf %96, %74 : vector<2x64xf32>
    %108 = arith.addf %106, %107 : vector<2x64xf32>
    %cst_31 = arith.constant dense<0.000000e+00> : vector<2x192xf32>
    %109 = tpu.matmul %108, %3, %cst_31 {dimension_numbers = #tpu.dot_dimension_numbers<[1], [0], [0], [1], [0, 0, 1, 1], [], []>} : vector<2x64xf32>, vector<64x192xf32>, vector<2x192xf32> -> vector<2x192xf32>
    %110 = vector.broadcast %4 : vector<1x192xf32> to vector<2x192xf32>
    %111 = arith.addf %109, %110 : vector<2x192xf32>
    %c0_32 = arith.constant 0 : index
    %c3 = arith.constant 3 : index
    %c0_33 = arith.constant 0 : index
    %112 = vector.load %arg0[%c0_32, %c3, %c0_33] : memref<2x8x1xf32, #tpu.memory_space<vmem>>, vector<2x1x1xf32>
    %113 = vector.shape_cast %112 : vector<2x1x1xf32> to vector<2x1xf32>
    %114 = vector.broadcast %113 : vector<2x1xf32> to vector<2x192xf32>
    %115 = vector.broadcast %1 : vector<1x192xf32> to vector<2x192xf32>
    %116 = arith.mulf %114, %115 : vector<2x192xf32>
    %117 = vector.broadcast %2 : vector<1x192xf32> to vector<2x192xf32>
    %118 = arith.addf %116, %117 : vector<2x192xf32>
    %cst_34 = arith.constant dense<0.000000e+00> : vector<2x192xf32>
    %119 = tpu.matmul %108, %0, %cst_34 {dimension_numbers = #tpu.dot_dimension_numbers<[1], [0], [0], [1], [0, 0, 1, 1], [], []>} : vector<2x64xf32>, vector<64x192xf32>, vector<2x192xf32> -> vector<2x192xf32>
    %120 = arith.addf %118, %111 : vector<2x192xf32>
    %121 = vector.extract_strided_slice %120 {offsets = [0, 0], sizes = [2, 128], strides = [1, 1]} : vector<2x192xf32> to vector<2x128xf32>
    %122 = vector.extract_strided_slice %119 {offsets = [0, 0], sizes = [2, 128], strides = [1, 1]} : vector<2x192xf32> to vector<2x128xf32>
    %123 = arith.addf %121, %122 : vector<2x128xf32>
    %124 = arith.negf %123 : vector<2x128xf32>
    %125 = math.exp %124 : vector<2x128xf32>
    %cst_35 = arith.constant 1.000000e+00 : f32
    %126 = vector.broadcast %cst_35 : f32 to vector<2x128xf32>
    %127 = arith.addf %126, %125 : vector<2x128xf32>
    %128 = arith.divf %126, %127 : vector<2x128xf32>
    %129 = vector.extract_strided_slice %128 {offsets = [0, 0], sizes = [2, 64], strides = [1, 1]} : vector<2x128xf32> to vector<2x64xf32>
    %130 = vector.extract_strided_slice %128 {offsets = [0, 64], sizes = [2, 64], strides = [1, 1]} : vector<2x128xf32> to vector<2x64xf32>
    %131 = vector.extract_strided_slice %120 {offsets = [0, 128], sizes = [2, 64], strides = [1, 1]} : vector<2x192xf32> to vector<2x64xf32>
    %132 = vector.extract_strided_slice %119 {offsets = [0, 128], sizes = [2, 64], strides = [1, 1]} : vector<2x192xf32> to vector<2x64xf32>
    %133 = vector.broadcast %5 : vector<1x64xf32> to vector<2x64xf32>
    %134 = arith.addf %132, %133 : vector<2x64xf32>
    %135 = arith.mulf %129, %134 : vector<2x64xf32>
    %136 = arith.addf %131, %135 : vector<2x64xf32>
    %137 = math.tanh %136 : vector<2x64xf32>
    %cst_36 = arith.constant 1.000000e+00 : f32
    %138 = vector.broadcast %cst_36 : f32 to vector<2x64xf32>
    %139 = arith.subf %138, %130 : vector<2x64xf32>
    %140 = arith.mulf %139, %137 : vector<2x64xf32>
    %141 = arith.mulf %130, %108 : vector<2x64xf32>
    %142 = arith.addf %140, %141 : vector<2x64xf32>
    %cst_37 = arith.constant dense<0.000000e+00> : vector<2x192xf32>
    %143 = tpu.matmul %142, %3, %cst_37 {dimension_numbers = #tpu.dot_dimension_numbers<[1], [0], [0], [1], [0, 0, 1, 1], [], []>} : vector<2x64xf32>, vector<64x192xf32>, vector<2x192xf32> -> vector<2x192xf32>
    %144 = vector.broadcast %4 : vector<1x192xf32> to vector<2x192xf32>
    %145 = arith.addf %143, %144 : vector<2x192xf32>
    %c0_38 = arith.constant 0 : index
    %c4 = arith.constant 4 : index
    %c0_39 = arith.constant 0 : index
    %146 = vector.load %arg0[%c0_38, %c4, %c0_39] : memref<2x8x1xf32, #tpu.memory_space<vmem>>, vector<2x1x1xf32>
    %147 = vector.shape_cast %146 : vector<2x1x1xf32> to vector<2x1xf32>
    %148 = vector.broadcast %147 : vector<2x1xf32> to vector<2x192xf32>
    %149 = vector.broadcast %1 : vector<1x192xf32> to vector<2x192xf32>
    %150 = arith.mulf %148, %149 : vector<2x192xf32>
    %151 = vector.broadcast %2 : vector<1x192xf32> to vector<2x192xf32>
    %152 = arith.addf %150, %151 : vector<2x192xf32>
    %cst_40 = arith.constant dense<0.000000e+00> : vector<2x192xf32>
    %153 = tpu.matmul %142, %0, %cst_40 {dimension_numbers = #tpu.dot_dimension_numbers<[1], [0], [0], [1], [0, 0, 1, 1], [], []>} : vector<2x64xf32>, vector<64x192xf32>, vector<2x192xf32> -> vector<2x192xf32>
    %154 = arith.addf %152, %145 : vector<2x192xf32>
    %155 = vector.extract_strided_slice %154 {offsets = [0, 0], sizes = [2, 128], strides = [1, 1]} : vector<2x192xf32> to vector<2x128xf32>
    %156 = vector.extract_strided_slice %153 {offsets = [0, 0], sizes = [2, 128], strides = [1, 1]} : vector<2x192xf32> to vector<2x128xf32>
    %157 = arith.addf %155, %156 : vector<2x128xf32>
    %158 = arith.negf %157 : vector<2x128xf32>
    %159 = math.exp %158 : vector<2x128xf32>
    %cst_41 = arith.constant 1.000000e+00 : f32
    %160 = vector.broadcast %cst_41 : f32 to vector<2x128xf32>
    %161 = arith.addf %160, %159 : vector<2x128xf32>
    %162 = arith.divf %160, %161 : vector<2x128xf32>
    %163 = vector.extract_strided_slice %162 {offsets = [0, 0], sizes = [2, 64], strides = [1, 1]} : vector<2x128xf32> to vector<2x64xf32>
    %164 = vector.extract_strided_slice %162 {offsets = [0, 64], sizes = [2, 64], strides = [1, 1]} : vector<2x128xf32> to vector<2x64xf32>
    %165 = vector.extract_strided_slice %154 {offsets = [0, 128], sizes = [2, 64], strides = [1, 1]} : vector<2x192xf32> to vector<2x64xf32>
    %166 = vector.extract_strided_slice %153 {offsets = [0, 128], sizes = [2, 64], strides = [1, 1]} : vector<2x192xf32> to vector<2x64xf32>
    %167 = vector.broadcast %5 : vector<1x64xf32> to vector<2x64xf32>
    %168 = arith.addf %166, %167 : vector<2x64xf32>
    %169 = arith.mulf %163, %168 : vector<2x64xf32>
    %170 = arith.addf %165, %169 : vector<2x64xf32>
    %171 = math.tanh %170 : vector<2x64xf32>
    %cst_42 = arith.constant 1.000000e+00 : f32
    %172 = vector.broadcast %cst_42 : f32 to vector<2x64xf32>
    %173 = arith.subf %172, %164 : vector<2x64xf32>
    %174 = arith.mulf %173, %171 : vector<2x64xf32>
    %175 = arith.mulf %164, %142 : vector<2x64xf32>
    %176 = arith.addf %174, %175 : vector<2x64xf32>
    %cst_43 = arith.constant dense<0.000000e+00> : vector<2x192xf32>
    %177 = tpu.matmul %176, %3, %cst_43 {dimension_numbers = #tpu.dot_dimension_numbers<[1], [0], [0], [1], [0, 0, 1, 1], [], []>} : vector<2x64xf32>, vector<64x192xf32>, vector<2x192xf32> -> vector<2x192xf32>
    %178 = vector.broadcast %4 : vector<1x192xf32> to vector<2x192xf32>
    %179 = arith.addf %177, %178 : vector<2x192xf32>
    %c0_44 = arith.constant 0 : index
    %c5 = arith.constant 5 : index
    %c0_45 = arith.constant 0 : index
    %180 = vector.load %arg0[%c0_44, %c5, %c0_45] : memref<2x8x1xf32, #tpu.memory_space<vmem>>, vector<2x1x1xf32>
    %181 = vector.shape_cast %180 : vector<2x1x1xf32> to vector<2x1xf32>
    %182 = vector.broadcast %181 : vector<2x1xf32> to vector<2x192xf32>
    %183 = vector.broadcast %1 : vector<1x192xf32> to vector<2x192xf32>
    %184 = arith.mulf %182, %183 : vector<2x192xf32>
    %185 = vector.broadcast %2 : vector<1x192xf32> to vector<2x192xf32>
    %186 = arith.addf %184, %185 : vector<2x192xf32>
    %cst_46 = arith.constant dense<0.000000e+00> : vector<2x192xf32>
    %187 = tpu.matmul %176, %0, %cst_46 {dimension_numbers = #tpu.dot_dimension_numbers<[1], [0], [0], [1], [0, 0, 1, 1], [], []>} : vector<2x64xf32>, vector<64x192xf32>, vector<2x192xf32> -> vector<2x192xf32>
    %188 = arith.addf %186, %179 : vector<2x192xf32>
    %189 = vector.extract_strided_slice %188 {offsets = [0, 0], sizes = [2, 128], strides = [1, 1]} : vector<2x192xf32> to vector<2x128xf32>
    %190 = vector.extract_strided_slice %187 {offsets = [0, 0], sizes = [2, 128], strides = [1, 1]} : vector<2x192xf32> to vector<2x128xf32>
    %191 = arith.addf %189, %190 : vector<2x128xf32>
    %192 = arith.negf %191 : vector<2x128xf32>
    %193 = math.exp %192 : vector<2x128xf32>
    %cst_47 = arith.constant 1.000000e+00 : f32
    %194 = vector.broadcast %cst_47 : f32 to vector<2x128xf32>
    %195 = arith.addf %194, %193 : vector<2x128xf32>
    %196 = arith.divf %194, %195 : vector<2x128xf32>
    %197 = vector.extract_strided_slice %196 {offsets = [0, 0], sizes = [2, 64], strides = [1, 1]} : vector<2x128xf32> to vector<2x64xf32>
    %198 = vector.extract_strided_slice %196 {offsets = [0, 64], sizes = [2, 64], strides = [1, 1]} : vector<2x128xf32> to vector<2x64xf32>
    %199 = vector.extract_strided_slice %188 {offsets = [0, 128], sizes = [2, 64], strides = [1, 1]} : vector<2x192xf32> to vector<2x64xf32>
    %200 = vector.extract_strided_slice %187 {offsets = [0, 128], sizes = [2, 64], strides = [1, 1]} : vector<2x192xf32> to vector<2x64xf32>
    %201 = vector.broadcast %5 : vector<1x64xf32> to vector<2x64xf32>
    %202 = arith.addf %200, %201 : vector<2x64xf32>
    %203 = arith.mulf %197, %202 : vector<2x64xf32>
    %204 = arith.addf %199, %203 : vector<2x64xf32>
    %205 = math.tanh %204 : vector<2x64xf32>
    %cst_48 = arith.constant 1.000000e+00 : f32
    %206 = vector.broadcast %cst_48 : f32 to vector<2x64xf32>
    %207 = arith.subf %206, %198 : vector<2x64xf32>
    %208 = arith.mulf %207, %205 : vector<2x64xf32>
    %209 = arith.mulf %198, %176 : vector<2x64xf32>
    %210 = arith.addf %208, %209 : vector<2x64xf32>
    %cst_49 = arith.constant dense<0.000000e+00> : vector<2x192xf32>
    %211 = tpu.matmul %210, %3, %cst_49 {dimension_numbers = #tpu.dot_dimension_numbers<[1], [0], [0], [1], [0, 0, 1, 1], [], []>} : vector<2x64xf32>, vector<64x192xf32>, vector<2x192xf32> -> vector<2x192xf32>
    %212 = vector.broadcast %4 : vector<1x192xf32> to vector<2x192xf32>
    %213 = arith.addf %211, %212 : vector<2x192xf32>
    %c0_50 = arith.constant 0 : index
    %c6 = arith.constant 6 : index
    %c0_51 = arith.constant 0 : index
    %214 = vector.load %arg0[%c0_50, %c6, %c0_51] : memref<2x8x1xf32, #tpu.memory_space<vmem>>, vector<2x1x1xf32>
    %215 = vector.shape_cast %214 : vector<2x1x1xf32> to vector<2x1xf32>
    %216 = vector.broadcast %215 : vector<2x1xf32> to vector<2x192xf32>
    %217 = vector.broadcast %1 : vector<1x192xf32> to vector<2x192xf32>
    %218 = arith.mulf %216, %217 : vector<2x192xf32>
    %219 = vector.broadcast %2 : vector<1x192xf32> to vector<2x192xf32>
    %220 = arith.addf %218, %219 : vector<2x192xf32>
    %cst_52 = arith.constant dense<0.000000e+00> : vector<2x192xf32>
    %221 = tpu.matmul %210, %0, %cst_52 {dimension_numbers = #tpu.dot_dimension_numbers<[1], [0], [0], [1], [0, 0, 1, 1], [], []>} : vector<2x64xf32>, vector<64x192xf32>, vector<2x192xf32> -> vector<2x192xf32>
    %222 = arith.addf %220, %213 : vector<2x192xf32>
    %223 = vector.extract_strided_slice %222 {offsets = [0, 0], sizes = [2, 128], strides = [1, 1]} : vector<2x192xf32> to vector<2x128xf32>
    %224 = vector.extract_strided_slice %221 {offsets = [0, 0], sizes = [2, 128], strides = [1, 1]} : vector<2x192xf32> to vector<2x128xf32>
    %225 = arith.addf %223, %224 : vector<2x128xf32>
    %226 = arith.negf %225 : vector<2x128xf32>
    %227 = math.exp %226 : vector<2x128xf32>
    %cst_53 = arith.constant 1.000000e+00 : f32
    %228 = vector.broadcast %cst_53 : f32 to vector<2x128xf32>
    %229 = arith.addf %228, %227 : vector<2x128xf32>
    %230 = arith.divf %228, %229 : vector<2x128xf32>
    %231 = vector.extract_strided_slice %230 {offsets = [0, 0], sizes = [2, 64], strides = [1, 1]} : vector<2x128xf32> to vector<2x64xf32>
    %232 = vector.extract_strided_slice %230 {offsets = [0, 64], sizes = [2, 64], strides = [1, 1]} : vector<2x128xf32> to vector<2x64xf32>
    %233 = vector.extract_strided_slice %222 {offsets = [0, 128], sizes = [2, 64], strides = [1, 1]} : vector<2x192xf32> to vector<2x64xf32>
    %234 = vector.extract_strided_slice %221 {offsets = [0, 128], sizes = [2, 64], strides = [1, 1]} : vector<2x192xf32> to vector<2x64xf32>
    %235 = vector.broadcast %5 : vector<1x64xf32> to vector<2x64xf32>
    %236 = arith.addf %234, %235 : vector<2x64xf32>
    %237 = arith.mulf %231, %236 : vector<2x64xf32>
    %238 = arith.addf %233, %237 : vector<2x64xf32>
    %239 = math.tanh %238 : vector<2x64xf32>
    %cst_54 = arith.constant 1.000000e+00 : f32
    %240 = vector.broadcast %cst_54 : f32 to vector<2x64xf32>
    %241 = arith.subf %240, %232 : vector<2x64xf32>
    %242 = arith.mulf %241, %239 : vector<2x64xf32>
    %243 = arith.mulf %232, %210 : vector<2x64xf32>
    %244 = arith.addf %242, %243 : vector<2x64xf32>
    %cst_55 = arith.constant dense<0.000000e+00> : vector<2x192xf32>
    %245 = tpu.matmul %244, %3, %cst_55 {dimension_numbers = #tpu.dot_dimension_numbers<[1], [0], [0], [1], [0, 0, 1, 1], [], []>} : vector<2x64xf32>, vector<64x192xf32>, vector<2x192xf32> -> vector<2x192xf32>
    %246 = vector.broadcast %4 : vector<1x192xf32> to vector<2x192xf32>
    %247 = arith.addf %245, %246 : vector<2x192xf32>
    %c0_56 = arith.constant 0 : index
    %c7 = arith.constant 7 : index
    %c0_57 = arith.constant 0 : index
    %248 = vector.load %arg0[%c0_56, %c7, %c0_57] : memref<2x8x1xf32, #tpu.memory_space<vmem>>, vector<2x1x1xf32>
    %249 = vector.shape_cast %248 : vector<2x1x1xf32> to vector<2x1xf32>
    %250 = vector.broadcast %249 : vector<2x1xf32> to vector<2x192xf32>
    %251 = vector.broadcast %1 : vector<1x192xf32> to vector<2x192xf32>
    %252 = arith.mulf %250, %251 : vector<2x192xf32>
    %253 = vector.broadcast %2 : vector<1x192xf32> to vector<2x192xf32>
    %254 = arith.addf %252, %253 : vector<2x192xf32>
    %cst_58 = arith.constant dense<0.000000e+00> : vector<2x192xf32>
    %255 = tpu.matmul %244, %0, %cst_58 {dimension_numbers = #tpu.dot_dimension_numbers<[1], [0], [0], [1], [0, 0, 1, 1], [], []>} : vector<2x64xf32>, vector<64x192xf32>, vector<2x192xf32> -> vector<2x192xf32>
    %256 = arith.addf %254, %247 : vector<2x192xf32>
    %257 = vector.extract_strided_slice %256 {offsets = [0, 0], sizes = [2, 128], strides = [1, 1]} : vector<2x192xf32> to vector<2x128xf32>
    %258 = vector.extract_strided_slice %255 {offsets = [0, 0], sizes = [2, 128], strides = [1, 1]} : vector<2x192xf32> to vector<2x128xf32>
    %259 = arith.addf %257, %258 : vector<2x128xf32>
    %260 = arith.negf %259 : vector<2x128xf32>
    %261 = math.exp %260 : vector<2x128xf32>
    %cst_59 = arith.constant 1.000000e+00 : f32
    %262 = vector.broadcast %cst_59 : f32 to vector<2x128xf32>
    %263 = arith.addf %262, %261 : vector<2x128xf32>
    %264 = arith.divf %262, %263 : vector<2x128xf32>
    %265 = vector.extract_strided_slice %264 {offsets = [0, 0], sizes = [2, 64], strides = [1, 1]} : vector<2x128xf32> to vector<2x64xf32>
    %266 = vector.extract_strided_slice %264 {offsets = [0, 64], sizes = [2, 64], strides = [1, 1]} : vector<2x128xf32> to vector<2x64xf32>
    %267 = vector.extract_strided_slice %256 {offsets = [0, 128], sizes = [2, 64], strides = [1, 1]} : vector<2x192xf32> to vector<2x64xf32>
    %268 = vector.extract_strided_slice %255 {offsets = [0, 128], sizes = [2, 64], strides = [1, 1]} : vector<2x192xf32> to vector<2x64xf32>
    %269 = vector.broadcast %5 : vector<1x64xf32> to vector<2x64xf32>
    %270 = arith.addf %268, %269 : vector<2x64xf32>
    %271 = arith.mulf %265, %270 : vector<2x64xf32>
    %272 = arith.addf %267, %271 : vector<2x64xf32>
    %273 = math.tanh %272 : vector<2x64xf32>
    %cst_60 = arith.constant 1.000000e+00 : f32
    %274 = vector.broadcast %cst_60 : f32 to vector<2x64xf32>
    %275 = arith.subf %274, %266 : vector<2x64xf32>
    %276 = arith.mulf %275, %273 : vector<2x64xf32>
    %277 = arith.mulf %266, %244 : vector<2x64xf32>
    %278 = arith.addf %276, %277 : vector<2x64xf32>
    %cst_61 = arith.constant dense<0.000000e+00> : vector<2x192xf32>
    %279 = tpu.matmul %278, %3, %cst_61 {dimension_numbers = #tpu.dot_dimension_numbers<[1], [0], [0], [1], [0, 0, 1, 1], [], []>} : vector<2x64xf32>, vector<64x192xf32>, vector<2x192xf32> -> vector<2x192xf32>
    %280 = vector.broadcast %4 : vector<1x192xf32> to vector<2x192xf32>
    %281 = arith.addf %279, %280 : vector<2x192xf32>
    %cst_62 = arith.constant 0.000000e+00 : f32
    %282 = vector.broadcast %cst_62 : f32 to vector<2x192xf32>
    %cst_63 = arith.constant dense<0.000000e+00> : vector<2x192xf32>
    %283 = tpu.matmul %278, %0, %cst_63 {dimension_numbers = #tpu.dot_dimension_numbers<[1], [0], [0], [1], [0, 0, 1, 1], [], []>} : vector<2x64xf32>, vector<64x192xf32>, vector<2x192xf32> -> vector<2x192xf32>
    %284 = arith.addf %282, %281 : vector<2x192xf32>
    %285 = vector.extract_strided_slice %284 {offsets = [0, 0], sizes = [2, 128], strides = [1, 1]} : vector<2x192xf32> to vector<2x128xf32>
    %286 = vector.extract_strided_slice %283 {offsets = [0, 0], sizes = [2, 128], strides = [1, 1]} : vector<2x192xf32> to vector<2x128xf32>
    %287 = arith.addf %285, %286 : vector<2x128xf32>
    %288 = arith.negf %287 : vector<2x128xf32>
    %289 = math.exp %288 : vector<2x128xf32>
    %cst_64 = arith.constant 1.000000e+00 : f32
    %290 = vector.broadcast %cst_64 : f32 to vector<2x128xf32>
    %291 = arith.addf %290, %289 : vector<2x128xf32>
    %292 = arith.divf %290, %291 : vector<2x128xf32>
    %293 = vector.extract_strided_slice %292 {offsets = [0, 0], sizes = [2, 64], strides = [1, 1]} : vector<2x128xf32> to vector<2x64xf32>
    %294 = vector.extract_strided_slice %292 {offsets = [0, 64], sizes = [2, 64], strides = [1, 1]} : vector<2x128xf32> to vector<2x64xf32>
    %295 = vector.extract_strided_slice %284 {offsets = [0, 128], sizes = [2, 64], strides = [1, 1]} : vector<2x192xf32> to vector<2x64xf32>
    %296 = vector.extract_strided_slice %283 {offsets = [0, 128], sizes = [2, 64], strides = [1, 1]} : vector<2x192xf32> to vector<2x64xf32>
    %297 = vector.broadcast %5 : vector<1x64xf32> to vector<2x64xf32>
    %298 = arith.addf %296, %297 : vector<2x64xf32>
    %299 = arith.mulf %293, %298 : vector<2x64xf32>
    %300 = arith.addf %295, %299 : vector<2x64xf32>
    %301 = math.tanh %300 : vector<2x64xf32>
    %cst_65 = arith.constant 1.000000e+00 : f32
    %302 = vector.broadcast %cst_65 : f32 to vector<2x64xf32>
    %303 = arith.subf %302, %294 : vector<2x64xf32>
    %304 = arith.mulf %303, %301 : vector<2x64xf32>
    %305 = arith.mulf %294, %278 : vector<2x64xf32>
    %306 = arith.addf %304, %305 : vector<2x64xf32>
    %307 = vector.extract_strided_slice %306 {offsets = [0, 32], sizes = [2, 32], strides = [1, 1]} : vector<2x64xf32> to vector<2x32xf32>
    %c0_66 = arith.constant 0 : index
    %c0_67 = arith.constant 0 : index
    %308 = vector.load %arg8[%c0_66, %c0_67] : memref<32x1xf32, #tpu.memory_space<vmem>>, vector<32x1xf32>
    %cst_68 = arith.constant dense<0.000000e+00> : vector<2x1xf32>
    %309 = tpu.matmul %307, %308, %cst_68 {dimension_numbers = #tpu.dot_dimension_numbers<[1], [0], [0], [1], [0, 0, 1, 1], [], []>} : vector<2x32xf32>, vector<32x1xf32>, vector<2x1xf32> -> vector<2x1xf32>
    %c0_69 = arith.constant 0 : index
    %c0_70 = arith.constant 0 : index
    %310 = vector.load %arg9[%c0_69, %c0_70] : memref<1x1xf32, #tpu.memory_space<vmem>>, vector<1x1xf32>
    %311 = vector.broadcast %310 : vector<1x1xf32> to vector<2x1xf32>
    %312 = arith.addf %309, %311 : vector<2x1xf32>
    %c0_71 = arith.constant 0 : index
    %c0_72 = arith.constant 0 : index
    %313 = vector.load %arg10[%c0_71, %c0_72] : memref<2x1xf32, #tpu.memory_space<vmem>>, vector<2x1xf32>
    tpu.vector_store %arg10[%c0_71, %c0_72], %312 {strides = array<i32>} : memref<2x1xf32, #tpu.memory_space<vmem>>, vector<2x1xf32>,
    return
  }
}

</mosaic_0001>

<llo_original>
// kernel: tpu_custom_call.1
$region0: #{tpu_custom_call.1}
  #allocation0 [shape = 'u32[]', space=smem, size = 0x4, offset = 0x4, fixed_abs, tag = 'smem constant byte address 0x4 - core index']
  #allocation1 [shape = 'u32[144,128]{1,0:T(1,128)}', space=vmem, size = 0x12000, scoped, tag = 'internal scratch']
  #allocation2 [shape = 'f32[1,1]{1,0:T(1,128)S(1)}', space=vmem, size = 0x200, scoped, tag = 'scoped memory for tpu_custom_call.1']
  %s0 = inlined_call_operand.vmem [shape: f32[2,8,1], index: 0, kind: input, shape index: {}]
  %s1 = inlined_call_operand.hbm [shape: f32[64,192], index: 1, kind: input, shape index: {}]
  %s2 = inlined_call_operand.vmem [shape: f32[1,192], index: 2, kind: input, shape index: {}]
  %s3 = inlined_call_operand.vmem [shape: f32[1,192], index: 3, kind: input, shape index: {}]
  %s4 = inlined_call_operand.hbm [shape: f32[64,192], index: 4, kind: input, shape index: {}]
  %s5 = inlined_call_operand.vmem [shape: f32[1,192], index: 5, kind: input, shape index: {}]
  %s6 = inlined_call_operand.vmem [shape: f32[1,64], index: 6, kind: input, shape index: {}]
  %s7 = inlined_call_operand.vmem [shape: f32[1,192], index: 7, kind: input, shape index: {}]
  %s8 = inlined_call_operand.vmem [shape: f32[32,1], index: 8, kind: input, shape index: {}]
  %s9 = inlined_call_operand.<no memory space> [shape: f32[1,1], index: 9, kind: input, shape index: {}]
  %s10 = inlined_call_operand.vmem [shape: f32[2,1], index: 10, kind: output, shape index: {}]
  %s11 = sld [smem:[#allocation0]]
  $region58: #{tpu_custom_call.1} parent=0
    _
  %s13 = ssub.s32 1, %s11
  %s14 = scalar_select 0, %s13, %s11
  %v15 = vstv %s9
  %16 = vst [vmem:[#allocation2] sm:$0x1] %v15
  $region1: #{tpu_custom_call.1} parent=0
    #allocation3 [shape = 'u8[65536]{0}', space=vmem, size = 0x10000, scoped, tag = 'input window, operand 1, single buffered']
    #allocation4 [shape = 's32[1]{0}', space=sflag, size = 0x4, scoped, tag = 'scoped memory for tpu_custom_call.1']
    #allocation5 [shape = 'u8[65536]{0}', space=vmem, size = 0x10000, scoped, tag = 'input window, operand 4, single buffered']
    #allocation6 [shape = 's32[1]{0}', space=sflag, size = 0x4, scoped, tag = 'scoped memory for tpu_custom_call.1']
    %17 = vsyncpa [#allocation4], 0
    %18 = vsyncpa [#allocation6], 0
    // Predicated region
    $region2: #{tpu_custom_call.1} parent=1 // pred_check
      _
    $region3: #{tpu_custom_call.1} parent=1 // pred_check_branch
      %20 = sbr.rel (0) target = $region5
    $region4: #{tpu_custom_call.1} parent=1 // pred_region
      _
    $region5: #{tpu_custom_call.1} parent=1 // pred_fallthru
      _
    // Predicated region
    $region6: #{tpu_custom_call.1} parent=1 // pred_check
      _
    $region7: #{tpu_custom_call.1} parent=1 // pred_check_branch
      %22 = sbr.rel (0) target = $region9
    $region8: #{tpu_custom_call.1} parent=1 // pred_region
      %s24 = ssub.s32 2048, 2048
      %25 = vsyncadd [#allocation4], %s24
      %s26 = sshll.u32 [#allocation3], 4
      %s27 = int_to_ptr.vmem [resolvable:$true] %s26
      %32 = dma.hbm_to_vmem [thread:$0]  %s1, 2048, %s27, [#allocation4], 256, 256, 16
    $region9: #{tpu_custom_call.1} parent=1 // pred_fallthru
      _
    // Predicated region
    $region10: #{tpu_custom_call.1} parent=1 // pred_check
      _
    $region11: #{tpu_custom_call.1} parent=1 // pred_check_branch
      %34 = sbr.rel (0) target = $region13
    $region12: #{tpu_custom_call.1} parent=1 // pred_region
      _
    $region13: #{tpu_custom_call.1} parent=1 // pred_fallthru
      _
    // Predicated region
    $region14: #{tpu_custom_call.1} parent=1 // pred_check
      _
    $region15: #{tpu_custom_call.1} parent=1 // pred_check_branch
      %36 = sbr.rel (0) target = $region17
    $region16: #{tpu_custom_call.1} parent=1 // pred_region
      _
    $region17: #{tpu_custom_call.1} parent=1 // pred_fallthru
      _
    // Predicated region
    $region18: #{tpu_custom_call.1} parent=1 // pred_check
      _
    $region19: #{tpu_custom_call.1} parent=1 // pred_check_branch
      %38 = sbr.rel (0) target = $region21
    $region20: #{tpu_custom_call.1} parent=1 // pred_region
      %s40 = ssub.s32 2048, 2048
      %41 = vsyncadd [#allocation6], %s40
      %s42 = sshll.u32 [#allocation5], 4
      %s43 = int_to_ptr.vmem [resolvable:$true] %s42
      %48 = dma.hbm_to_vmem [thread:$0]  %s4, 2048, %s43, [#allocation6], 256, 256, 16
    $region21: #{tpu_custom_call.1} parent=1 // pred_fallthru
      _
    // Predicated region
    $region22: #{tpu_custom_call.1} parent=1 // pred_check
      _
    $region23: #{tpu_custom_call.1} parent=1 // pred_check_branch
      %50 = sbr.rel (0) target = $region25
    $region24: #{tpu_custom_call.1} parent=1 // pred_region
      _
    $region25: #{tpu_custom_call.1} parent=1 // pred_fallthru
      _
    // Predicated region
    $region26: #{tpu_custom_call.1} parent=1 // pred_check
      _
    $region27: #{tpu_custom_call.1} parent=1 // pred_check_branch
      %52 = sbr.rel (0) target = $region29
    $region28: #{tpu_custom_call.1} parent=1 // pred_region
      _
    $region29: #{tpu_custom_call.1} parent=1 // pred_fallthru
      _
    // Predicated region
    $region30: #{tpu_custom_call.1} parent=1 // pred_check
      _
    $region31: #{tpu_custom_call.1} parent=1 // pred_check_branch
      %54 = sbr.rel (0) target = $region33
    $region32: #{tpu_custom_call.1} parent=1 // pred_region
      _
    $region33: #{tpu_custom_call.1} parent=1 // pred_fallthru
      _
    // Predicated region
    $region34: #{tpu_custom_call.1} parent=1 // pred_check
      _
    $region35: #{tpu_custom_call.1} parent=1 // pred_check_branch
      %56 = sbr.rel (0) target = $region37
    $region36: #{tpu_custom_call.1} parent=1 // pred_region
      _
    $region37: #{tpu_custom_call.1} parent=1 // pred_fallthru
      _
    // Predicated region
    $region38: #{tpu_custom_call.1} parent=1 // pred_check
      _
    $region39: #{tpu_custom_call.1} parent=1 // pred_check_branch
      %58 = sbr.rel (0) target = $region41
    $region40: #{tpu_custom_call.1} parent=1 // pred_region
      _
    $region41: #{tpu_custom_call.1} parent=1 // pred_fallthru
      _
    // Predicated region
    $region42: #{tpu_custom_call.1} parent=1 // pred_check
      _
    $region43: #{tpu_custom_call.1} parent=1 // pred_check_branch
      %60 = sbr.rel (0) target = $region45
    $region44: #{tpu_custom_call.1} parent=1 // pred_region
      %61 = dma.done [#allocation4], 2048
    $region45: #{tpu_custom_call.1} parent=1 // pred_fallthru
      _
    // Predicated region
    $region46: #{tpu_custom_call.1} parent=1 // pred_check
      _
    $region47: #{tpu_custom_call.1} parent=1 // pred_check_branch
      %63 = sbr.rel (0) target = $region49
    $region48: #{tpu_custom_call.1} parent=1 // pred_region
      %64 = dma.done [#allocation6], 2048
    $region49: #{tpu_custom_call.1} parent=1 // pred_fallthru
      _
    %v65 = vld [vmem:[#allocation3] sm:$0xff]
    %v66 = vld [vmem:[#allocation3 + $0x8] sm:$0xff]
    %v67 = vld [vmem:[#allocation3 + $0x10] sm:$0xff]
    %v68 = vld [vmem:[#allocation3 + $0x18] sm:$0xff]
    %v69 = vld [vmem:[#allocation3 + $0x20] sm:$0xff]
    %v70 = vld [vmem:[#allocation3 + $0x28] sm:$0xff]
    %v71 = vld [vmem:[#allocation3 + $0x30] sm:$0xff]
    %v72 = vld [vmem:[#allocation3 + $0x38] sm:$0xff]
    %v73 = vld [vmem:[#allocation3 + $0x40] sm:$0xff]
    %v74 = vld [vmem:[#allocation3 + $0x48] sm:$0xff]
    %v75 = vld [vmem:[#allocation3 + $0x50] sm:$0xff]
    %v76 = vld [vmem:[#allocation3 + $0x58] sm:$0xff]
    %v77 = vld [vmem:[#allocation3 + $0x60] sm:$0xff]
    %v78 = vld [vmem:[#allocation3 + $0x68] sm:$0xff]
    %v79 = vld [vmem:[#allocation3 + $0x70] sm:$0xff]
    %v80 = vld [vmem:[#allocation3 + $0x78] sm:$0xff]
    %v81 = vld [vmem:[%s2] sm:$0x3]
    %v82 = vld [vmem:[%s3] sm:$0x3]
    %v83 = vld [vmem:[#allocation5] sm:$0xff]
    %v84 = vld [vmem:[#allocation5 + $0x8] sm:$0xff]
    %v85 = vld [vmem:[#allocation5 + $0x10] sm:$0xff]
    %v86 = vld [vmem:[#allocation5 + $0x18] sm:$0xff]
    %v87 = vld [vmem:[#allocation5 + $0x20] sm:$0xff]
    %v88 = vld [vmem:[#allocation5 + $0x28] sm:$0xff]
    %v89 = vld [vmem:[#allocation5 + $0x30] sm:$0xff]
    %v90 = vld [vmem:[#allocation5 + $0x38] sm:$0xff]
    %v91 = vld [vmem:[#allocation5 + $0x40] sm:$0xff]
    %v92 = vld [vmem:[#allocation5 + $0x48] sm:$0xff]
    %v93 = vld [vmem:[#allocation5 + $0x50] sm:$0xff]
    %v94 = vld [vmem:[#allocation5 + $0x58] sm:$0xff]
    %v95 = vld [vmem:[#allocation5 + $0x60] sm:$0xff]
    %v96 = vld [vmem:[#allocation5 + $0x68] sm:$0xff]
    %v97 = vld [vmem:[#allocation5 + $0x70] sm:$0xff]
    %v98 = vld [vmem:[#allocation5 + $0x78] sm:$0xff]
    %v99 = vld [vmem:[%s5] sm:$0x3]
    %v100 = vld [vmem:[%s6] sm:$0x1]
    %v101 = vld [vmem:[%s7] sm:$0x3]
    %v103 = vlaneseq
    %v104 = vshrl.u32 %v103, 7
    %v105 = vsub.s32 0, %v104
    %v106 = vrot.slane %v101, %v105
    %v107 = vlaneseq
    %v108 = vshrl.u32 %v107, 7
    %v109 = vsub.s32 1, %v108
    %v110 = vrot.slane %v101, %v109
    %v113 = vld [vmem:[%s0] sm:$0x1]
    %v114 = vld [vmem:[%s0 + $0x8] sm:$0x1]
    %116 = vset.pattern.permute.xlu0 0
    %117 = vperm.xlu0 %116, %v113
    %v118 = vpop.permute.xlu0 %117
    %121 = vset.pattern.permute.xlu0 0
    %122 = vperm.xlu0 %121, %v114
    %v123 = vpop.permute.xlu0 %122
    %v126 = vlaneseq
    %v127 = vshrl.u32 %v126, 7
    %v128 = vsub.s32 0, %v127
    %v129 = vrot.slane %v81, %v128
    %v130 = vlaneseq
    %v131 = vshrl.u32 %v130, 7
    %v132 = vsub.s32 1, %v131
    %v133 = vrot.slane %v81, %v132
    %v136 = vmul.f32 %v118, %v129
    %v137 = vmul.f32 %v118, %v133
    %v138 = vmul.f32 %v123, %v129
    %v139 = vmul.f32 %v123, %v133
    %v141 = vlaneseq
    %v142 = vshrl.u32 %v141, 7
    %v143 = vsub.s32 0, %v142
    %v144 = vrot.slane %v82, %v143
    %v145 = vlaneseq
    %v146 = vshrl.u32 %v145, 7
    %v147 = vsub.s32 1, %v146
    %v148 = vrot.slane %v82, %v147
    %v151 = vadd.f32 %v136, %v144
    %v152 = vadd.f32 %v137, %v148
    %v153 = vadd.f32 %v138, %v144
    %v154 = vadd.f32 %v139, %v148
    %vm155 = vcmask 523264
    %v157 = vsel %vm155, 0.0, 0
    %159 = vmatprep.subr.mxu0 %v66
    %160 = vmatpush1.msra.mxu0 %v65
    %161 = vmatprep.subr.mxu0 %v68
    %162 = vmatpush1.msra.mxu0 %v67
    %163 = vmatprep.subr.mxu0 %v70
    %164 = vmatpush1.msra.mxu0 %v69
    %165 = vmatprep.subr.mxu0 %v72
    %166 = vmatpush1.msra.mxu0 %v71
    %167 = vmatprep.subr.mxu0 %v74
    %168 = vmatpush1.msra.mxu0 %v73
    %169 = vmatprep.subr.mxu0 %v76
    %170 = vmatpush1.msra.mxu0 %v75
    %171 = vmatprep.subr.mxu0 %v78
    %172 = vmatpush1.msra.mxu0 %v77
    %173 = vmatprep.subr.mxu0 %v80
    %174 = vmatpush1.msra.mxu0 %v79
    %175 = vmatprep.subr.mxu0 0.0
    %176 = vmatpush1.msra.mxu0 0.0
    %177 = vmatprep.subr.mxu0 0.0
    %178 = vmatpush1.msra.mxu0 0.0
    %179 = vmatprep.subr.mxu0 0.0
    %180 = vmatpush1.msra.mxu0 0.0
    %181 = vmatprep.subr.mxu0 0.0
    %182 = vmatpush1.msra.mxu0 0.0
    %183 = vmatprep.subr.mxu0 0.0
    %184 = vmatpush1.msra.mxu0 0.0
    %185 = vmatprep.subr.mxu0 0.0
    %186 = vmatpush1.msra.mxu0 0.0
    %187 = vmatprep.subr.mxu0 0.0
    %188 = vmatpush1.msra.mxu0 0.0
    %189 = vmatprep.subr.mxu0 0.0
    %190 = vmatpush1.msra.mxu0 0.0
    %191 = vmatprep.subr.mxu0 0.0
    %192 = vmatpush1.msra.mxu0 0.0
    %193 = vmatprep.subr.mxu0 0.0
    %194 = vmatpush1.msra.mxu0 0.0
    %195 = vmatprep.subr.mxu0 0.0
    %196 = vmatpush1.msra.mxu0 0.0
    %197 = vmatprep.subr.mxu0 0.0
    %198 = vmatpush1.msra.mxu0 0.0
    %199 = vmatprep.subr.mxu0 0.0
    %200 = vmatpush1.msra.mxu0 0.0
    %201 = vmatprep.subr.mxu0 0.0
    %202 = vmatpush1.msra.mxu0 0.0
    %203 = vmatprep.subr.mxu0 0.0
    %204 = vmatpush1.msra.mxu0 0.0
    %205 = vmatprep.subr.mxu0 0.0
    %206 = vmatpush1.msra.mxu0 0.0
    %207 = vmatprep.subr.mxu0 0.0
    %208 = vmatpush1.msra.mxu0 0.0
    %209 = vmatprep.subr.mxu0 0.0
    %210 = vmatpush1.msra.mxu0 0.0
    %211 = vmatprep.subr.mxu0 0.0
    %212 = vmatpush1.msra.mxu0 0.0
    %213 = vmatprep.subr.mxu0 0.0
    %214 = vmatpush1.msra.mxu0 0.0
    %215 = vmatprep.subr.mxu0 0.0
    %216 = vmatpush1.msra.mxu0 0.0
    %217 = vmatprep.subr.mxu0 0.0
    %218 = vmatpush1.msra.mxu0 0.0
    %219 = vmatprep.subr.mxu0 0.0
    %220 = vmatpush1.msra.mxu0 0.0
    %221 = vmatprep.subr.mxu0 0.0
    %222 = vmatpush1.msra.mxu0 0.0
    %223 = vmatprep.mubr.f32.mxu0 0.0
    %224 = vmatmul.mubr.f32.gmra.mrb[0].mxu0 %v157
    %v225 = vpop.f32.mrb[0].mxu0
    %v226 = vadd.f32 0.0, %v225
    %v227 = vpop.f32.mrb[0].mxu0
    %v228 = vadd.f32 0.0, %v227
    %229 = vdwg.mxu0
    %v230 = vadd.f32 %v151, %v106
    %v231 = vadd.f32 %v152, %v110
    %v232 = vadd.f32 %v153, %v106
    %v233 = vadd.f32 %v154, %v110
    %v235 = vrot.slane %v226, 1
    %v238 = vadd.f32 %v230, %v226
    %v239 = vadd.f32 %v232, %v235
    %v240 = vxor.u32 %v238, 2147483648
    %v241 = vxor.u32 %v239, 2147483648
    %v242 = vmul.f32 %v240, 1.442695
    %v243 = vpow.pop %v242
    %v244 = vmul.f32 %v241, 1.442695
    %v245 = vpow.pop %v244
    %v246 = vadd.f32 %v243, 1.0
    %v247 = vadd.f32 %v245, 1.0
    %v248 = vrcp.pop %v246
    %v249 = vmul.f32 1.0, %v248
    %v250 = vrcp.pop %v247
    %v251 = vmul.f32 1.0, %v250
    %v253 = vlaneseq
    %v254 = vshrl.u32 %v253, 7
    %v255 = vsub.s32 0, %v254
    %v256 = vrot.slane %v100, %v255
    %v258 = vadd.f32 %v228, %v256
    %v260 = vrot.slane %v258, 1
    %v263 = vmul.f32 %v249, %v258
    %v264 = vmul.f32 %v251, %v260
    %v265 = vadd.f32 %v231, %v263
    %v266 = vadd.f32 %v233, %v264
    %v267 = vtanh.pop %v265
    %v268 = vtanh.pop %v266
    %v269 = vsub.f32 1.0, %v249
    %v270 = vsub.f32 1.0, %v251
    %273 = vrot.lane.b32.xlu0 %v267, 64
    %v274 = vpop.permute.xlu0 %273
    %275 = vrot.lane.b32.xlu0 %v268, 64
    %v276 = vpop.permute.xlu0 %275
    %v279 = vmul.f32 %v269, %v274
    %v280 = vmul.f32 %v270, %v276
    %v281 = vmul.f32 %v249, 0.0
    %v282 = vmul.f32 %v251, 0.0
    %v283 = vadd.f32 %v279, %v281
    %v284 = vadd.f32 %v280, %v282
    %v286 = vlaneseq
    %v287 = vshrl.u32 %v286, 7
    %v288 = vsub.s32 0, %v287
    %v289 = vrot.slane %v99, %v288
    %v290 = vlaneseq
    %v291 = vshrl.u32 %v290, 7
    %v292 = vsub.s32 1, %v291
    %v293 = vrot.slane %v99, %v292
    %v298 = vrot.slane %v284, 7
    %vm299 = vcmask 1041409
    %v300 = vsel %vm299, %v298, %v283
    %301 = vrot.lane.b32.xlu0 %v300, 64
    %v302 = vpop.permute.xlu0 %301
    %v303 = vsel %vm155, %v302, 0
    %305 = vmatprep.subr.mxu0 %v84
    %306 = vmatpush1.msra.mxu0 %v83
    %307 = vmatprep.subr.mxu0 %v86
    %308 = vmatpush1.msra.mxu0 %v85
    %309 = vmatprep.subr.mxu0 %v88
    %310 = vmatpush1.msra.mxu0 %v87
    %311 = vmatprep.subr.mxu0 %v90
    %312 = vmatpush1.msra.mxu0 %v89
    %313 = vmatprep.subr.mxu0 %v92
    %314 = vmatpush1.msra.mxu0 %v91
    %315 = vmatprep.subr.mxu0 %v94
    %316 = vmatpush1.msra.mxu0 %v93
    %317 = vmatprep.subr.mxu0 %v96
    %318 = vmatpush1.msra.mxu0 %v95
    %319 = vmatprep.subr.mxu0 %v98
    %320 = vmatpush1.msra.mxu0 %v97
    %321 = vmatprep.subr.mxu0 0.0
    %322 = vmatpush1.msra.mxu0 0.0
    %323 = vmatprep.subr.mxu0 0.0
    %324 = vmatpush1.msra.mxu0 0.0
    %325 = vmatprep.subr.mxu0 0.0
    %326 = vmatpush1.msra.mxu0 0.0
    %327 = vmatprep.subr.mxu0 0.0
    %328 = vmatpush1.msra.mxu0 0.0
    %329 = vmatprep.subr.mxu0 0.0
    %330 = vmatpush1.msra.mxu0 0.0
    %331 = vmatprep.subr.mxu0 0.0
    %332 = vmatpush1.msra.mxu0 0.0
    %333 = vmatprep.subr.mxu0 0.0
    %334 = vmatpush1.msra.mxu0 0.0
    %335 = vmatprep.subr.mxu0 0.0
    %336 = vmatpush1.msra.mxu0 0.0
    %337 = vmatprep.subr.mxu0 0.0
    %338 = vmatpush1.msra.mxu0 0.0
    %339 = vmatprep.subr.mxu0 0.0
    %340 = vmatpush1.msra.mxu0 0.0
    %341 = vmatprep.subr.mxu0 0.0
    %342 = vmatpush1.msra.mxu0 0.0
    %343 = vmatprep.subr.mxu0 0.0
    %344 = vmatpush1.msra.mxu0 0.0
    %345 = vmatprep.subr.mxu0 0.0
    %346 = vmatpush1.msra.mxu0 0.0
    %347 = vmatprep.subr.mxu0 0.0
    %348 = vmatpush1.msra.mxu0 0.0
    %349 = vmatprep.subr.mxu0 0.0
    %350 = vmatpush1.msra.mxu0 0.0
    %351 = vmatprep.subr.mxu0 0.0
    %352 = vmatpush1.msra.mxu0 0.0
    %353 = vmatprep.subr.mxu0 0.0
    %354 = vmatpush1.msra.mxu0 0.0
    %355 = vmatprep.subr.mxu0 0.0
    %356 = vmatpush1.msra.mxu0 0.0
    %357 = vmatprep.subr.mxu0 0.0
    %358 = vmatpush1.msra.mxu0 0.0
    %359 = vmatprep.subr.mxu0 0.0
    %360 = vmatpush1.msra.mxu0 0.0
    %361 = vmatprep.subr.mxu0 0.0
    %362 = vmatpush1.msra.mxu0 0.0
    %363 = vmatprep.subr.mxu0 0.0
    %364 = vmatpush1.msra.mxu0 0.0
    %365 = vmatprep.subr.mxu0 0.0
    %366 = vmatpush1.msra.mxu0 0.0
    %367 = vmatprep.subr.mxu0 0.0
    %368 = vmatpush1.msra.mxu0 0.0
    %369 = vmatprep.mubr.f32.mxu0 0.0
    %370 = vmatmul.mubr.f32.gmra.mrb[0].mxu0 %v303
    %v371 = vpop.f32.mrb[0].mxu0
    %v372 = vadd.f32 %v289, %v371
    %v373 = vpop.f32.mrb[0].mxu0
    %v374 = vadd.f32 %v293, %v373
    %375 = vdwg.mxu0
    %v376 = vld [vmem:[%s0 + $0x1] sm:$0x1]
    %v377 = vld [vmem:[%s0 + $0x9] sm:$0x1]
    %379 = vset.pattern.permute.xlu0 0
    %380 = vperm.xlu0 %379, %v376
    %v381 = vpop.permute.xlu0 %380
    %384 = vset.pattern.permute.xlu0 0
    %385 = vperm.xlu0 %384, %v377
    %v386 = vpop.permute.xlu0 %385
    %v388 = vmul.f32 %v381, %v129
    %v389 = vmul.f32 %v381, %v133
    %v390 = vmul.f32 %v386, %v129
    %v391 = vmul.f32 %v386, %v133
    %v392 = vadd.f32 %v388, %v144
    %v393 = vadd.f32 %v389, %v148
    %v394 = vadd.f32 %v390, %v144
    %v395 = vadd.f32 %v391, %v148
    %396 = vmatprep.subr.mxu0 %v66
    %397 = vmatpush1.msra.mxu0 %v65
    %398 = vmatprep.subr.mxu0 %v68
    %399 = vmatpush1.msra.mxu0 %v67
    %400 = vmatprep.subr.mxu0 %v70
    %401 = vmatpush1.msra.mxu0 %v69
    %402 = vmatprep.subr.mxu0 %v72
    %403 = vmatpush1.msra.mxu0 %v71
    %404 = vmatprep.subr.mxu0 %v74
    %405 = vmatpush1.msra.mxu0 %v73
    %406 = vmatprep.subr.mxu0 %v76
    %407 = vmatpush1.msra.mxu0 %v75
    %408 = vmatprep.subr.mxu0 %v78
    %409 = vmatpush1.msra.mxu0 %v77
    %410 = vmatprep.subr.mxu0 %v80
    %411 = vmatpush1.msra.mxu0 %v79
    %412 = vmatprep.subr.mxu0 0.0
    %413 = vmatpush1.msra.mxu0 0.0
    %414 = vmatprep.subr.mxu0 0.0
    %415 = vmatpush1.msra.mxu0 0.0
    %416 = vmatprep.subr.mxu0 0.0
    %417 = vmatpush1.msra.mxu0 0.0
    %418 = vmatprep.subr.mxu0 0.0
    %419 = vmatpush1.msra.mxu0 0.0
    %420 = vmatprep.subr.mxu0 0.0
    %421 = vmatpush1.msra.mxu0 0.0
    %422 = vmatprep.subr.mxu0 0.0
    %423 = vmatpush1.msra.mxu0 0.0
    %424 = vmatprep.subr.mxu0 0.0
    %425 = vmatpush1.msra.mxu0 0.0
    %426 = vmatprep.subr.mxu0 0.0
    %427 = vmatpush1.msra.mxu0 0.0
    %428 = vmatprep.subr.mxu0 0.0
    %429 = vmatpush1.msra.mxu0 0.0
    %430 = vmatprep.subr.mxu0 0.0
    %431 = vmatpush1.msra.mxu0 0.0
    %432 = vmatprep.subr.mxu0 0.0
    %433 = vmatpush1.msra.mxu0 0.0
    %434 = vmatprep.subr.mxu0 0.0
    %435 = vmatpush1.msra.mxu0 0.0
    %436 = vmatprep.subr.mxu0 0.0
    %437 = vmatpush1.msra.mxu0 0.0
    %438 = vmatprep.subr.mxu0 0.0
    %439 = vmatpush1.msra.mxu0 0.0
    %440 = vmatprep.subr.mxu0 0.0
    %441 = vmatpush1.msra.mxu0 0.0
    %442 = vmatprep.subr.mxu0 0.0
    %443 = vmatpush1.msra.mxu0 0.0
    %444 = vmatprep.subr.mxu0 0.0
    %445 = vmatpush1.msra.mxu0 0.0
    %446 = vmatprep.subr.mxu0 0.0
    %447 = vmatpush1.msra.mxu0 0.0
    %448 = vmatprep.subr.mxu0 0.0
    %449 = vmatpush1.msra.mxu0 0.0
    %450 = vmatprep.subr.mxu0 0.0
    %451 = vmatpush1.msra.mxu0 0.0
    %452 = vmatprep.subr.mxu0 0.0
    %453 = vmatpush1.msra.mxu0 0.0
    %454 = vmatprep.subr.mxu0 0.0
    %455 = vmatpush1.msra.mxu0 0.0
    %456 = vmatprep.subr.mxu0 0.0
    %457 = vmatpush1.msra.mxu0 0.0
    %458 = vmatprep.subr.mxu0 0.0
    %459 = vmatpush1.msra.mxu0 0.0
    %460 = vmatprep.mubr.f32.mxu0 0.0
    %461 = vmatmul.mubr.f32.gmra.mrb[0].mxu0 %v303
    %v462 = vpop.f32.mrb[0].mxu0
    %v463 = vadd.f32 0.0, %v462
    %v464 = vpop.f32.mrb[0].mxu0
    %v465 = vadd.f32 0.0, %v464
    %466 = vdwg.mxu0
    %v469 = vrot.slane %v372, 1
    %v470 = vrot.slane %v374, 1
    %v475 = vadd.f32 %v392, %v372
    %v476 = vadd.f32 %v393, %v374
    %v477 = vadd.f32 %v394, %v469
    %v478 = vadd.f32 %v395, %v470
    %v480 = vrot.slane %v463, 1
    %v483 = vadd.f32 %v475, %v463
    %v484 = vadd.f32 %v477, %v480
    %v485 = vxor.u32 %v483, 2147483648
    %v486 = vxor.u32 %v484, 2147483648
    %v487 = vmul.f32 %v485, 1.442695
    %v488 = vpow.pop %v487
    %v489 = vmul.f32 %v486, 1.442695
    %v490 = vpow.pop %v489
    %v491 = vadd.f32 %v488, 1.0
    %v492 = vadd.f32 %v490, 1.0
    %v493 = vrcp.pop %v491
    %v494 = vmul.f32 1.0, %v493
    %v495 = vrcp.pop %v492
    %v496 = vmul.f32 1.0, %v495
    %v497 = vadd.f32 %v465, %v256
    %v499 = vrot.slane %v497, 1
    %v502 = vmul.f32 %v494, %v497
    %v503 = vmul.f32 %v496, %v499
    %v504 = vadd.f32 %v476, %v502
    %v505 = vadd.f32 %v478, %v503
    %v506 = vtanh.pop %v504
    %v507 = vtanh.pop %v505
    %v508 = vsub.f32 1.0, %v494
    %v509 = vsub.f32 1.0, %v496
    %512 = vrot.lane.b32.xlu0 %v506, 64
    %v513 = vpop.permute.xlu0 %512
    %514 = vrot.lane.b32.xlu0 %v507, 64
    %v515 = vpop.permute.xlu0 %514
    %v518 = vmul.f32 %v508, %v513
    %v519 = vmul.f32 %v509, %v515
    %v520 = vmul.f32 %v494, %v283
    %v521 = vmul.f32 %v496, %v284
    %v522 = vadd.f32 %v518, %v520
    %v523 = vadd.f32 %v519, %v521
    %v526 = vrot.slane %v523, 7
    %v527 = vsel %vm299, %v526, %v522
    %528 = vrot.lane.b32.xlu0 %v527, 64
    %v529 = vpop.permute.xlu0 %528
    %v530 = vsel %vm155, %v529, 0
    %532 = vmatprep.subr.mxu0 %v84
    %533 = vmatpush1.msra.mxu0 %v83
    %534 = vmatprep.subr.mxu0 %v86
    %535 = vmatpush1.msra.mxu0 %v85
    %536 = vmatprep.subr.mxu0 %v88
    %537 = vmatpush1.msra.mxu0 %v87
    %538 = vmatprep.subr.mxu0 %v90
    %539 = vmatpush1.msra.mxu0 %v89
    %540 = vmatprep.subr.mxu0 %v92
    %541 = vmatpush1.msra.mxu0 %v91
    %542 = vmatprep.subr.mxu0 %v94
    %543 = vmatpush1.msra.mxu0 %v93
    %544 = vmatprep.subr.mxu0 %v96
    %545 = vmatpush1.msra.mxu0 %v95
    %546 = vmatprep.subr.mxu0 %v98
    %547 = vmatpush1.msra.mxu0 %v97
    %548 = vmatprep.subr.mxu0 0.0
    %549 = vmatpush1.msra.mxu0 0.0
    %550 = vmatprep.subr.mxu0 0.0
    %551 = vmatpush1.msra.mxu0 0.0
    %552 = vmatprep.subr.mxu0 0.0
    %553 = vmatpush1.msra.mxu0 0.0
    %554 = vmatprep.subr.mxu0 0.0
    %555 = vmatpush1.msra.mxu0 0.0
    %556 = vmatprep.subr.mxu0 0.0
    %557 = vmatpush1.msra.mxu0 0.0
    %558 = vmatprep.subr.mxu0 0.0
    %559 = vmatpush1.msra.mxu0 0.0
    %560 = vmatprep.subr.mxu0 0.0
    %561 = vmatpush1.msra.mxu0 0.0
    %562 = vmatprep.subr.mxu0 0.0
    %563 = vmatpush1.msra.mxu0 0.0
    %564 = vmatprep.subr.mxu0 0.0
    %565 = vmatpush1.msra.mxu0 0.0
    %566 = vmatprep.subr.mxu0 0.0
    %567 = vmatpush1.msra.mxu0 0.0
    %568 = vmatprep.subr.mxu0 0.0
    %569 = vmatpush1.msra.mxu0 0.0
    %570 = vmatprep.subr.mxu0 0.0
    %571 = vmatpush1.msra.mxu0 0.0
    %572 = vmatprep.subr.mxu0 0.0
    %573 = vmatpush1.msra.mxu0 0.0
    %574 = vmatprep.subr.mxu0 0.0
    %575 = vmatpush1.msra.mxu0 0.0
    %576 = vmatprep.subr.mxu0 0.0
    %577 = vmatpush1.msra.mxu0 0.0
    %578 = vmatprep.subr.mxu0 0.0
    %579 = vmatpush1.msra.mxu0 0.0
    %580 = vmatprep.subr.mxu0 0.0
    %581 = vmatpush1.msra.mxu0 0.0
    %582 = vmatprep.subr.mxu0 0.0
    %583 = vmatpush1.msra.mxu0 0.0
    %584 = vmatprep.subr.mxu0 0.0
    %585 = vmatpush1.msra.mxu0 0.0
    %586 = vmatprep.subr.mxu0 0.0
    %587 = vmatpush1.msra.mxu0 0.0
    %588 = vmatprep.subr.mxu0 0.0
    %589 = vmatpush1.msra.mxu0 0.0
    %590 = vmatprep.subr.mxu0 0.0
    %591 = vmatpush1.msra.mxu0 0.0
    %592 = vmatprep.subr.mxu0 0.0
    %593 = vmatpush1.msra.mxu0 0.0
    %594 = vmatprep.subr.mxu0 0.0
    %595 = vmatpush1.msra.mxu0 0.0
    %596 = vmatprep.mubr.f32.mxu0 0.0
    %597 = vmatmul.mubr.f32.gmra.mrb[0].mxu0 %v530
    %v598 = vpop.f32.mrb[0].mxu0
    %v599 = vadd.f32 %v289, %v598
    %v600 = vpop.f32.mrb[0].mxu0
    %v601 = vadd.f32 %v293, %v600
    %602 = vdwg.mxu0
    %v603 = vld [vmem:[%s0 + $0x2] sm:$0x1]
    %v604 = vld [vmem:[%s0 + $0xa] sm:$0x1]
    %606 = vset.pattern.permute.xlu0 0
    %607 = vperm.xlu0 %606, %v603
    %v608 = vpop.permute.xlu0 %607
    %611 = vset.pattern.permute.xlu0 0
    %612 = vperm.xlu0 %611, %v604
    %v613 = vpop.permute.xlu0 %612
    %v615 = vmul.f32 %v608, %v129
    %v616 = vmul.f32 %v608, %v133
    %v617 = vmul.f32 %v613, %v129
    %v618 = vmul.f32 %v613, %v133
    %v619 = vadd.f32 %v615, %v144
    %v620 = vadd.f32 %v616, %v148
    %v621 = vadd.f32 %v617, %v144
    %v622 = vadd.f32 %v618, %v148
    %623 = vmatprep.subr.mxu0 %v66
    %624 = vmatpush1.msra.mxu0 %v65
    %625 = vmatprep.subr.mxu0 %v68
    %626 = vmatpush1.msra.mxu0 %v67
    %627 = vmatprep.subr.mxu0 %v70
    %628 = vmatpush1.msra.mxu0 %v69
    %629 = vmatprep.subr.mxu0 %v72
    %630 = vmatpush1.msra.mxu0 %v71
    %631 = vmatprep.subr.mxu0 %v74
    %632 = vmatpush1.msra.mxu0 %v73
    %633 = vmatprep.subr.mxu0 %v76
    %634 = vmatpush1.msra.mxu0 %v75
    %635 = vmatprep.subr.mxu0 %v78
    %636 = vmatpush1.msra.mxu0 %v77
    %637 = vmatprep.subr.mxu0 %v80
    %638 = vmatpush1.msra.mxu0 %v79
    %639 = vmatprep.subr.mxu0 0.0
    %640 = vmatpush1.msra.mxu0 0.0
    %641 = vmatprep.subr.mxu0 0.0
    %642 = vmatpush1.msra.mxu0 0.0
    %643 = vmatprep.subr.mxu0 0.0
    %644 = vmatpush1.msra.mxu0 0.0
    %645 = vmatprep.subr.mxu0 0.0
    %646 = vmatpush1.msra.mxu0 0.0
    %647 = vmatprep.subr.mxu0 0.0
    %648 = vmatpush1.msra.mxu0 0.0
    %649 = vmatprep.subr.mxu0 0.0
    %650 = vmatpush1.msra.mxu0 0.0
    %651 = vmatprep.subr.mxu0 0.0
    %652 = vmatpush1.msra.mxu0 0.0
    %653 = vmatprep.subr.mxu0 0.0
    %654 = vmatpush1.msra.mxu0 0.0
    %655 = vmatprep.subr.mxu0 0.0
    %656 = vmatpush1.msra.mxu0 0.0
    %657 = vmatprep.subr.mxu0 0.0
    %658 = vmatpush1.msra.mxu0 0.0
    %659 = vmatprep.subr.mxu0 0.0
    %660 = vmatpush1.msra.mxu0 0.0
    %661 = vmatprep.subr.mxu0 0.0
    %662 = vmatpush1.msra.mxu0 0.0
    %663 = vmatprep.subr.mxu0 0.0
    %664 = vmatpush1.msra.mxu0 0.0
    %665 = vmatprep.subr.mxu0 0.0
    %666 = vmatpush1.msra.mxu0 0.0
    %667 = vmatprep.subr.mxu0 0.0
    %668 = vmatpush1.msra.mxu0 0.0
    %669 = vmatprep.subr.mxu0 0.0
    %670 = vmatpush1.msra.mxu0 0.0
    %671 = vmatprep.subr.mxu0 0.0
    %672 = vmatpush1.msra.mxu0 0.0
    %673 = vmatprep.subr.mxu0 0.0
    %674 = vmatpush1.msra.mxu0 0.0
    %675 = vmatprep.subr.mxu0 0.0
    %676 = vmatpush1.msra.mxu0 0.0
    %677 = vmatprep.subr.mxu0 0.0
    %678 = vmatpush1.msra.mxu0 0.0
    %679 = vmatprep.subr.mxu0 0.0
    %680 = vmatpush1.msra.mxu0 0.0
    %681 = vmatprep.subr.mxu0 0.0
    %682 = vmatpush1.msra.mxu0 0.0
    %683 = vmatprep.subr.mxu0 0.0
    %684 = vmatpush1.msra.mxu0 0.0
    %685 = vmatprep.subr.mxu0 0.0
    %686 = vmatpush1.msra.mxu0 0.0
    %687 = vmatprep.mubr.f32.mxu0 0.0
    %688 = vmatmul.mubr.f32.gmra.mrb[0].mxu0 %v530
    %v689 = vpop.f32.mrb[0].mxu0
    %v690 = vadd.f32 0.0, %v689
    %v691 = vpop.f32.mrb[0].mxu0
    %v692 = vadd.f32 0.0, %v691
    %693 = vdwg.mxu0
    %v696 = vrot.slane %v599, 1
    %v697 = vrot.slane %v601, 1
    %v702 = vadd.f32 %v619, %v599
    %v703 = vadd.f32 %v620, %v601
    %v704 = vadd.f32 %v621, %v696
    %v705 = vadd.f32 %v622, %v697
    %v707 = vrot.slane %v690, 1
    %v710 = vadd.f32 %v702, %v690
    %v711 = vadd.f32 %v704, %v707
    %v712 = vxor.u32 %v710, 2147483648
    %v713 = vxor.u32 %v711, 2147483648
    %v714 = vmul.f32 %v712, 1.442695
    %v715 = vpow.pop %v714
    %v716 = vmul.f32 %v713, 1.442695
    %v717 = vpow.pop %v716
    %v718 = vadd.f32 %v715, 1.0
    %v719 = vadd.f32 %v717, 1.0
    %v720 = vrcp.pop %v718
    %v721 = vmul.f32 1.0, %v720
    %v722 = vrcp.pop %v719
    %v723 = vmul.f32 1.0, %v722
    %v724 = vadd.f32 %v692, %v256
    %v726 = vrot.slane %v724, 1
    %v729 = vmul.f32 %v721, %v724
    %v730 = vmul.f32 %v723, %v726
    %v731 = vadd.f32 %v703, %v729
    %v732 = vadd.f32 %v705, %v730
    %v733 = vtanh.pop %v731
    %v734 = vtanh.pop %v732
    %v735 = vsub.f32 1.0, %v721
    %v736 = vsub.f32 1.0, %v723
    %739 = vrot.lane.b32.xlu0 %v733, 64
    %v740 = vpop.permute.xlu0 %739
    %741 = vrot.lane.b32.xlu0 %v734, 64
    %v742 = vpop.permute.xlu0 %741
    %v745 = vmul.f32 %v735, %v740
    %v746 = vmul.f32 %v736, %v742
    %v747 = vmul.f32 %v721, %v522
    %v748 = vmul.f32 %v723, %v523
    %v749 = vadd.f32 %v745, %v747
    %v750 = vadd.f32 %v746, %v748
    %v753 = vrot.slane %v750, 7
    %v754 = vsel %vm299, %v753, %v749
    %755 = vrot.lane.b32.xlu0 %v754, 64
    %v756 = vpop.permute.xlu0 %755
    %v757 = vsel %vm155, %v756, 0
    %759 = vmatprep.subr.mxu0 %v84
    %760 = vmatpush1.msra.mxu0 %v83
    %761 = vmatprep.subr.mxu0 %v86
    %762 = vmatpush1.msra.mxu0 %v85
    %763 = vmatprep.subr.mxu0 %v88
    %764 = vmatpush1.msra.mxu0 %v87
    %765 = vmatprep.subr.mxu0 %v90
    %766 = vmatpush1.msra.mxu0 %v89
    %767 = vmatprep.subr.mxu0 %v92
    %768 = vmatpush1.msra.mxu0 %v91
    %769 = vmatprep.subr.mxu0 %v94
    %770 = vmatpush1.msra.mxu0 %v93
    %771 = vmatprep.subr.mxu0 %v96
    %772 = vmatpush1.msra.mxu0 %v95
    %773 = vmatprep.subr.mxu0 %v98
    %774 = vmatpush1.msra.mxu0 %v97
    %775 = vmatprep.subr.mxu0 0.0
    %776 = vmatpush1.msra.mxu0 0.0
    %777 = vmatprep.subr.mxu0 0.0
    %778 = vmatpush1.msra.mxu0 0.0
    %779 = vmatprep.subr.mxu0 0.0
    %780 = vmatpush1.msra.mxu0 0.0
    %781 = vmatprep.subr.mxu0 0.0
    %782 = vmatpush1.msra.mxu0 0.0
    %783 = vmatprep.subr.mxu0 0.0
    %784 = vmatpush1.msra.mxu0 0.0
    %785 = vmatprep.subr.mxu0 0.0
    %786 = vmatpush1.msra.mxu0 0.0
    %787 = vmatprep.subr.mxu0 0.0
    %788 = vmatpush1.msra.mxu0 0.0
    %789 = vmatprep.subr.mxu0 0.0
    %790 = vmatpush1.msra.mxu0 0.0
    %791 = vmatprep.subr.mxu0 0.0
    %792 = vmatpush1.msra.mxu0 0.0
    %793 = vmatprep.subr.mxu0 0.0
    %794 = vmatpush1.msra.mxu0 0.0
    %795 = vmatprep.subr.mxu0 0.0
    %796 = vmatpush1.msra.mxu0 0.0
    %797 = vmatprep.subr.mxu0 0.0
    %798 = vmatpush1.msra.mxu0 0.0
    %799 = vmatprep.subr.mxu0 0.0
    %800 = vmatpush1.msra.mxu0 0.0
    %801 = vmatprep.subr.mxu0 0.0
    %802 = vmatpush1.msra.mxu0 0.0
    %803 = vmatprep.subr.mxu0 0.0
    %804 = vmatpush1.msra.mxu0 0.0
    %805 = vmatprep.subr.mxu0 0.0
    %806 = vmatpush1.msra.mxu0 0.0
    %807 = vmatprep.subr.mxu0 0.0
    %808 = vmatpush1.msra.mxu0 0.0
    %809 = vmatprep.subr.mxu0 0.0
    %810 = vmatpush1.msra.mxu0 0.0
    %811 = vmatprep.subr.mxu0 0.0
    %812 = vmatpush1.msra.mxu0 0.0
    %813 = vmatprep.subr.mxu0 0.0
    %814 = vmatpush1.msra.mxu0 0.0
    %815 = vmatprep.subr.mxu0 0.0
    %816 = vmatpush1.msra.mxu0 0.0
    %817 = vmatprep.subr.mxu0 0.0
    %818 = vmatpush1.msra.mxu0 0.0
    %819 = vmatprep.subr.mxu0 0.0
    %820 = vmatpush1.msra.mxu0 0.0
    %821 = vmatprep.subr.mxu0 0.0
    %822 = vmatpush1.msra.mxu0 0.0
    %823 = vmatprep.mubr.f32.mxu0 0.0
    %824 = vmatmul.mubr.f32.gmra.mrb[0].mxu0 %v757
    %v825 = vpop.f32.mrb[0].mxu0
    %v826 = vadd.f32 %v289, %v825
    %v827 = vpop.f32.mrb[0].mxu0
    %v828 = vadd.f32 %v293, %v827
    %829 = vdwg.mxu0
    %v830 = vld [vmem:[%s0 + $0x3] sm:$0x1]
    %v831 = vld [vmem:[%s0 + $0xb] sm:$0x1]
    %833 = vset.pattern.permute.xlu0 0
    %834 = vperm.xlu0 %833, %v830
    %v835 = vpop.permute.xlu0 %834
    %838 = vset.pattern.permute.xlu0 0
    %839 = vperm.xlu0 %838, %v831
    %v840 = vpop.permute.xlu0 %839
    %v842 = vmul.f32 %v835, %v129
    %v843 = vmul.f32 %v835, %v133
    %v844 = vmul.f32 %v840, %v129
    %v845 = vmul.f32 %v840, %v133
    %v846 = vadd.f32 %v842, %v144
    %v847 = vadd.f32 %v843, %v148
    %v848 = vadd.f32 %v844, %v144
    %v849 = vadd.f32 %v845, %v148
    %850 = vmatprep.subr.mxu0 %v66
    %851 = vmatpush1.msra.mxu0 %v65
    %852 = vmatprep.subr.mxu0 %v68
    %853 = vmatpush1.msra.mxu0 %v67
    %854 = vmatprep.subr.mxu0 %v70
    %855 = vmatpush1.msra.mxu0 %v69
    %856 = vmatprep.subr.mxu0 %v72
    %857 = vmatpush1.msra.mxu0 %v71
    %858 = vmatprep.subr.mxu0 %v74
    %859 = vmatpush1.msra.mxu0 %v73
    %860 = vmatprep.subr.mxu0 %v76
    %861 = vmatpush1.msra.mxu0 %v75
    %862 = vmatprep.subr.mxu0 %v78
    %863 = vmatpush1.msra.mxu0 %v77
    %864 = vmatprep.subr.mxu0 %v80
    %865 = vmatpush1.msra.mxu0 %v79
    %866 = vmatprep.subr.mxu0 0.0
    %867 = vmatpush1.msra.mxu0 0.0
    %868 = vmatprep.subr.mxu0 0.0
    %869 = vmatpush1.msra.mxu0 0.0
    %870 = vmatprep.subr.mxu0 0.0
    %871 = vmatpush1.msra.mxu0 0.0
    %872 = vmatprep.subr.mxu0 0.0
    %873 = vmatpush1.msra.mxu0 0.0
    %874 = vmatprep.subr.mxu0 0.0
    %875 = vmatpush1.msra.mxu0 0.0
    %876 = vmatprep.subr.mxu0 0.0
    %877 = vmatpush1.msra.mxu0 0.0
    %878 = vmatprep.subr.mxu0 0.0
    %879 = vmatpush1.msra.mxu0 0.0
    %880 = vmatprep.subr.mxu0 0.0
    %881 = vmatpush1.msra.mxu0 0.0
    %882 = vmatprep.subr.mxu0 0.0
    %883 = vmatpush1.msra.mxu0 0.0
    %884 = vmatprep.subr.mxu0 0.0
    %885 = vmatpush1.msra.mxu0 0.0
    %886 = vmatprep.subr.mxu0 0.0
    %887 = vmatpush1.msra.mxu0 0.0
    %888 = vmatprep.subr.mxu0 0.0
    %889 = vmatpush1.msra.mxu0 0.0
    %890 = vmatprep.subr.mxu0 0.0
    %891 = vmatpush1.msra.mxu0 0.0
    %892 = vmatprep.subr.mxu0 0.0
    %893 = vmatpush1.msra.mxu0 0.0
    %894 = vmatprep.subr.mxu0 0.0
    %895 = vmatpush1.msra.mxu0 0.0
    %896 = vmatprep.subr.mxu0 0.0
    %897 = vmatpush1.msra.mxu0 0.0
    %898 = vmatprep.subr.mxu0 0.0
    %899 = vmatpush1.msra.mxu0 0.0
    %900 = vmatprep.subr.mxu0 0.0
    %901 = vmatpush1.msra.mxu0 0.0
    %902 = vmatprep.subr.mxu0 0.0
    %903 = vmatpush1.msra.mxu0 0.0
    %904 = vmatprep.subr.mxu0 0.0
    %905 = vmatpush1.msra.mxu0 0.0
    %906 = vmatprep.subr.mxu0 0.0
    %907 = vmatpush1.msra.mxu0 0.0
    %908 = vmatprep.subr.mxu0 0.0
    %909 = vmatpush1.msra.mxu0 0.0
    %910 = vmatprep.subr.mxu0 0.0
    %911 = vmatpush1.msra.mxu0 0.0
    %912 = vmatprep.subr.mxu0 0.0
    %913 = vmatpush1.msra.mxu0 0.0
    %914 = vmatprep.mubr.f32.mxu0 0.0
    %915 = vmatmul.mubr.f32.gmra.mrb[0].mxu0 %v757
    %v916 = vpop.f32.mrb[0].mxu0
    %v917 = vadd.f32 0.0, %v916
    %v918 = vpop.f32.mrb[0].mxu0
    %v919 = vadd.f32 0.0, %v918
    %920 = vdwg.mxu0
    %v923 = vrot.slane %v826, 1
    %v924 = vrot.slane %v828, 1
    %v929 = vadd.f32 %v846, %v826
    %v930 = vadd.f32 %v847, %v828
    %v931 = vadd.f32 %v848, %v923
    %v932 = vadd.f32 %v849, %v924
    %v934 = vrot.slane %v917, 1
    %v937 = vadd.f32 %v929, %v917
    %v938 = vadd.f32 %v931, %v934
    %v939 = vxor.u32 %v937, 2147483648
    %v940 = vxor.u32 %v938, 2147483648
    %v941 = vmul.f32 %v939, 1.442695
    %v942 = vpow.pop %v941
    %v943 = vmul.f32 %v940, 1.442695
    %v944 = vpow.pop %v943
    %v945 = vadd.f32 %v942, 1.0
    %v946 = vadd.f32 %v944, 1.0
    %v947 = vrcp.pop %v945
    %v948 = vmul.f32 1.0, %v947
    %v949 = vrcp.pop %v946
    %v950 = vmul.f32 1.0, %v949
    %v951 = vadd.f32 %v919, %v256
    %v953 = vrot.slane %v951, 1
    %v956 = vmul.f32 %v948, %v951
    %v957 = vmul.f32 %v950, %v953
    %v958 = vadd.f32 %v930, %v956
    %v959 = vadd.f32 %v932, %v957
    %v960 = vtanh.pop %v958
    %v961 = vtanh.pop %v959
    %v962 = vsub.f32 1.0, %v948
    %v963 = vsub.f32 1.0, %v950
    %966 = vrot.lane.b32.xlu0 %v960, 64
    %v967 = vpop.permute.xlu0 %966
    %968 = vrot.lane.b32.xlu0 %v961, 64
    %v969 = vpop.permute.xlu0 %968
    %v972 = vmul.f32 %v962, %v967
    %v973 = vmul.f32 %v963, %v969
    %v974 = vmul.f32 %v948, %v749
    %v975 = vmul.f32 %v950, %v750
    %v976 = vadd.f32 %v972, %v974
    %v977 = vadd.f32 %v973, %v975
    %v980 = vrot.slane %v977, 7
    %v981 = vsel %vm299, %v980, %v976
    %982 = vrot.lane.b32.xlu0 %v981, 64
    %v983 = vpop.permute.xlu0 %982
    %v984 = vsel %vm155, %v983, 0
    %986 = vmatprep.subr.mxu0 %v84
    %987 = vmatpush1.msra.mxu0 %v83
    %988 = vmatprep.subr.mxu0 %v86
    %989 = vmatpush1.msra.mxu0 %v85
    %990 = vmatprep.subr.mxu0 %v88
    %991 = vmatpush1.msra.mxu0 %v87
    %992 = vmatprep.subr.mxu0 %v90
    %993 = vmatpush1.msra.mxu0 %v89
    %994 = vmatprep.subr.mxu0 %v92
    %995 = vmatpush1.msra.mxu0 %v91
    %996 = vmatprep.subr.mxu0 %v94
    %997 = vmatpush1.msra.mxu0 %v93
    %998 = vmatprep.subr.mxu0 %v96
    %999 = vmatpush1.msra.mxu0 %v95
    %1000 = vmatprep.subr.mxu0 %v98
    %1001 = vmatpush1.msra.mxu0 %v97
    %1002 = vmatprep.subr.mxu0 0.0
    %1003 = vmatpush1.msra.mxu0 0.0
    %1004 = vmatprep.subr.mxu0 0.0
    %1005 = vmatpush1.msra.mxu0 0.0
    %1006 = vmatprep.subr.mxu0 0.0
    %1007 = vmatpush1.msra.mxu0 0.0
    %1008 = vmatprep.subr.mxu0 0.0
    %1009 = vmatpush1.msra.mxu0 0.0
    %1010 = vmatprep.subr.mxu0 0.0
    %1011 = vmatpush1.msra.mxu0 0.0
    %1012 = vmatprep.subr.mxu0 0.0
    %1013 = vmatpush1.msra.mxu0 0.0
    %1014 = vmatprep.subr.mxu0 0.0
    %1015 = vmatpush1.msra.mxu0 0.0
    %1016 = vmatprep.subr.mxu0 0.0
    %1017 = vmatpush1.msra.mxu0 0.0
    %1018 = vmatprep.subr.mxu0 0.0
    %1019 = vmatpush1.msra.mxu0 0.0
    %1020 = vmatprep.subr.mxu0 0.0
    %1021 = vmatpush1.msra.mxu0 0.0
    %1022 = vmatprep.subr.mxu0 0.0
    %1023 = vmatpush1.msra.mxu0 0.0
    %1024 = vmatprep.subr.mxu0 0.0
    %1025 = vmatpush1.msra.mxu0 0.0
    %1026 = vmatprep.subr.mxu0 0.0
    %1027 = vmatpush1.msra.mxu0 0.0
    %1028 = vmatprep.subr.mxu0 0.0
    %1029 = vmatpush1.msra.mxu0 0.0
    %1030 = vmatprep.subr.mxu0 0.0
    %1031 = vmatpush1.msra.mxu0 0.0
    %1032 = vmatprep.subr.mxu0 0.0
    %1033 = vmatpush1.msra.mxu0 0.0
    %1034 = vmatprep.subr.mxu0 0.0
    %1035 = vmatpush1.msra.mxu0 0.0
    %1036 = vmatprep.subr.mxu0 0.0
    %1037 = vmatpush1.msra.mxu0 0.0
    %1038 = vmatprep.subr.mxu0 0.0
    %1039 = vmatpush1.msra.mxu0 0.0
    %1040 = vmatprep.subr.mxu0 0.0
    %1041 = vmatpush1.msra.mxu0 0.0
    %1042 = vmatprep.subr.mxu0 0.0
    %1043 = vmatpush1.msra.mxu0 0.0
    %1044 = vmatprep.subr.mxu0 0.0
    %1045 = vmatpush1.msra.mxu0 0.0
    %1046 = vmatprep.subr.mxu0 0.0
    %1047 = vmatpush1.msra.mxu0 0.0
    %1048 = vmatprep.subr.mxu0 0.0
    %1049 = vmatpush1.msra.mxu0 0.0
    %1050 = vmatprep.mubr.f32.mxu0 0.0
    %1051 = vmatmul.mubr.f32.gmra.mrb[0].mxu0 %v984
    %v1052 = vpop.f32.mrb[0].mxu0
    %v1053 = vadd.f32 %v289, %v1052
    %v1054 = vpop.f32.mrb[0].mxu0
    %v1055 = vadd.f32 %v293, %v1054
    %1056 = vdwg.mxu0
    %v1057 = vld [vmem:[%s0 + $0x4] sm:$0x1]
    %v1058 = vld [vmem:[%s0 + $0xc] sm:$0x1]
    %1060 = vset.pattern.permute.xlu0 0
    %1061 = vperm.xlu0 %1060, %v1057
    %v1062 = vpop.permute.xlu0 %1061
    %1065 = vset.pattern.permute.xlu0 0
    %1066 = vperm.xlu0 %1065, %v1058
    %v1067 = vpop.permute.xlu0 %1066
    %v1069 = vmul.f32 %v1062, %v129
    %v1070 = vmul.f32 %v1062, %v133
    %v1071 = vmul.f32 %v1067, %v129
    %v1072 = vmul.f32 %v1067, %v133
    %v1073 = vadd.f32 %v1069, %v144
    %v1074 = vadd.f32 %v1070, %v148
    %v1075 = vadd.f32 %v1071, %v144
    %v1076 = vadd.f32 %v1072, %v148
    %1077 = vmatprep.subr.mxu0 %v66
    %1078 = vmatpush1.msra.mxu0 %v65
    %1079 = vmatprep.subr.mxu0 %v68
    %1080 = vmatpush1.msra.mxu0 %v67
    %1081 = vmatprep.subr.mxu0 %v70
    %1082 = vmatpush1.msra.mxu0 %v69
    %1083 = vmatprep.subr.mxu0 %v72
    %1084 = vmatpush1.msra.mxu0 %v71
    %1085 = vmatprep.subr.mxu0 %v74
    %1086 = vmatpush1.msra.mxu0 %v73
    %1087 = vmatprep.subr.mxu0 %v76
    %1088 = vmatpush1.msra.mxu0 %v75
    %1089 = vmatprep.subr.mxu0 %v78
    %1090 = vmatpush1.msra.mxu0 %v77
    %1091 = vmatprep.subr.mxu0 %v80
    %1092 = vmatpush1.msra.mxu0 %v79
    %1093 = vmatprep.subr.mxu0 0.0
    %1094 = vmatpush1.msra.mxu0 0.0
    %1095 = vmatprep.subr.mxu0 0.0
    %1096 = vmatpush1.msra.mxu0 0.0
    %1097 = vmatprep.subr.mxu0 0.0
    %1098 = vmatpush1.msra.mxu0 0.0
    %1099 = vmatprep.subr.mxu0 0.0
    %1100 = vmatpush1.msra.mxu0 0.0
    %1101 = vmatprep.subr.mxu0 0.0
    %1102 = vmatpush1.msra.mxu0 0.0
    %1103 = vmatprep.subr.mxu0 0.0
    %1104 = vmatpush1.msra.mxu0 0.0
    %1105 = vmatprep.subr.mxu0 0.0
    %1106 = vmatpush1.msra.mxu0 0.0
    %1107 = vmatprep.subr.mxu0 0.0
    %1108 = vmatpush1.msra.mxu0 0.0
    %1109 = vmatprep.subr.mxu0 0.0
    %1110 = vmatpush1.msra.mxu0 0.0
    %1111 = vmatprep.subr.mxu0 0.0
    %1112 = vmatpush1.msra.mxu0 0.0
    %1113 = vmatprep.subr.mxu0 0.0
    %1114 = vmatpush1.msra.mxu0 0.0
    %1115 = vmatprep.subr.mxu0 0.0
    %1116 = vmatpush1.msra.mxu0 0.0
    %1117 = vmatprep.subr.mxu0 0.0
    %1118 = vmatpush1.msra.mxu0 0.0
    %1119 = vmatprep.subr.mxu0 0.0
    %1120 = vmatpush1.msra.mxu0 0.0
    %1121 = vmatprep.subr.mxu0 0.0
    %1122 = vmatpush1.msra.mxu0 0.0
    %1123 = vmatprep.subr.mxu0 0.0
    %1124 = vmatpush1.msra.mxu0 0.0
    %1125 = vmatprep.subr.mxu0 0.0
    %1126 = vmatpush1.msra.mxu0 0.0
    %1127 = vmatprep.subr.mxu0 0.0
    %1128 = vmatpush1.msra.mxu0 0.0
    %1129 = vmatprep.subr.mxu0 0.0
    %1130 = vmatpush1.msra.mxu0 0.0
    %1131 = vmatprep.subr.mxu0 0.0
    %1132 = vmatpush1.msra.mxu0 0.0
    %1133 = vmatprep.subr.mxu0 0.0
    %1134 = vmatpush1.msra.mxu0 0.0
    %1135 = vmatprep.subr.mxu0 0.0
    %1136 = vmatpush1.msra.mxu0 0.0
    %1137 = vmatprep.subr.mxu0 0.0
    %1138 = vmatpush1.msra.mxu0 0.0
    %1139 = vmatprep.subr.mxu0 0.0
    %1140 = vmatpush1.msra.mxu0 0.0
    %1141 = vmatprep.mubr.f32.mxu0 0.0
    %1142 = vmatmul.mubr.f32.gmra.mrb[0].mxu0 %v984
    %v1143 = vpop.f32.mrb[0].mxu0
    %v1144 = vadd.f32 0.0, %v1143
    %v1145 = vpop.f32.mrb[0].mxu0
    %v1146 = vadd.f32 0.0, %v1145
    %1147 = vdwg.mxu0
    %v1150 = vrot.slane %v1053, 1
    %v1151 = vrot.slane %v1055, 1
    %v1156 = vadd.f32 %v1073, %v1053
    %v1157 = vadd.f32 %v1074, %v1055
    %v1158 = vadd.f32 %v1075, %v1150
    %v1159 = vadd.f32 %v1076, %v1151
    %v1161 = vrot.slane %v1144, 1
    %v1164 = vadd.f32 %v1156, %v1144
    %v1165 = vadd.f32 %v1158, %v1161
    %v1166 = vxor.u32 %v1164, 2147483648
    %v1167 = vxor.u32 %v1165, 2147483648
    %v1168 = vmul.f32 %v1166, 1.442695
    %v1169 = vpow.pop %v1168
    %v1170 = vmul.f32 %v1167, 1.442695
    %v1171 = vpow.pop %v1170
    %v1172 = vadd.f32 %v1169, 1.0
    %v1173 = vadd.f32 %v1171, 1.0
    %v1174 = vrcp.pop %v1172
    %v1175 = vmul.f32 1.0, %v1174
    %v1176 = vrcp.pop %v1173
    %v1177 = vmul.f32 1.0, %v1176
    %v1178 = vadd.f32 %v1146, %v256
    %v1180 = vrot.slane %v1178, 1
    %v1183 = vmul.f32 %v1175, %v1178
    %v1184 = vmul.f32 %v1177, %v1180
    %v1185 = vadd.f32 %v1157, %v1183
    %v1186 = vadd.f32 %v1159, %v1184
    %v1187 = vtanh.pop %v1185
    %v1188 = vtanh.pop %v1186
    %v1189 = vsub.f32 1.0, %v1175
    %v1190 = vsub.f32 1.0, %v1177
    %1193 = vrot.lane.b32.xlu0 %v1187, 64
    %v1194 = vpop.permute.xlu0 %1193
    %1195 = vrot.lane.b32.xlu0 %v1188, 64
    %v1196 = vpop.permute.xlu0 %1195
    %v1199 = vmul.f32 %v1189, %v1194
    %v1200 = vmul.f32 %v1190, %v1196
    %v1201 = vmul.f32 %v1175, %v976
    %v1202 = vmul.f32 %v1177, %v977
    %v1203 = vadd.f32 %v1199, %v1201
    %v1204 = vadd.f32 %v1200, %v1202
    %v1207 = vrot.slane %v1204, 7
    %v1208 = vsel %vm299, %v1207, %v1203
    %1209 = vrot.lane.b32.xlu0 %v1208, 64
    %v1210 = vpop.permute.xlu0 %1209
    %v1211 = vsel %vm155, %v1210, 0
    %1213 = vmatprep.subr.mxu0 %v84
    %1214 = vmatpush1.msra.mxu0 %v83
    %1215 = vmatprep.subr.mxu0 %v86
    %1216 = vmatpush1.msra.mxu0 %v85
    %1217 = vmatprep.subr.mxu0 %v88
    %1218 = vmatpush1.msra.mxu0 %v87
    %1219 = vmatprep.subr.mxu0 %v90
    %1220 = vmatpush1.msra.mxu0 %v89
    %1221 = vmatprep.subr.mxu0 %v92
    %1222 = vmatpush1.msra.mxu0 %v91
    %1223 = vmatprep.subr.mxu0 %v94
    %1224 = vmatpush1.msra.mxu0 %v93
    %1225 = vmatprep.subr.mxu0 %v96
    %1226 = vmatpush1.msra.mxu0 %v95
    %1227 = vmatprep.subr.mxu0 %v98
    %1228 = vmatpush1.msra.mxu0 %v97
    %1229 = vmatprep.subr.mxu0 0.0
    %1230 = vmatpush1.msra.mxu0 0.0
    %1231 = vmatprep.subr.mxu0 0.0
    %1232 = vmatpush1.msra.mxu0 0.0
    %1233 = vmatprep.subr.mxu0 0.0
    %1234 = vmatpush1.msra.mxu0 0.0
    %1235 = vmatprep.subr.mxu0 0.0
    %1236 = vmatpush1.msra.mxu0 0.0
    %1237 = vmatprep.subr.mxu0 0.0
    %1238 = vmatpush1.msra.mxu0 0.0
    %1239 = vmatprep.subr.mxu0 0.0
    %1240 = vmatpush1.msra.mxu0 0.0
    %1241 = vmatprep.subr.mxu0 0.0
    %1242 = vmatpush1.msra.mxu0 0.0
    %1243 = vmatprep.subr.mxu0 0.0
    %1244 = vmatpush1.msra.mxu0 0.0
    %1245 = vmatprep.subr.mxu0 0.0
    %1246 = vmatpush1.msra.mxu0 0.0
    %1247 = vmatprep.subr.mxu0 0.0
    %1248 = vmatpush1.msra.mxu0 0.0
    %1249 = vmatprep.subr.mxu0 0.0
    %1250 = vmatpush1.msra.mxu0 0.0
    %1251 = vmatprep.subr.mxu0 0.0
    %1252 = vmatpush1.msra.mxu0 0.0
    %1253 = vmatprep.subr.mxu0 0.0
    %1254 = vmatpush1.msra.mxu0 0.0
    %1255 = vmatprep.subr.mxu0 0.0
    %1256 = vmatpush1.msra.mxu0 0.0
    %1257 = vmatprep.subr.mxu0 0.0
    %1258 = vmatpush1.msra.mxu0 0.0
    %1259 = vmatprep.subr.mxu0 0.0
    %1260 = vmatpush1.msra.mxu0 0.0
    %1261 = vmatprep.subr.mxu0 0.0
    %1262 = vmatpush1.msra.mxu0 0.0
    %1263 = vmatprep.subr.mxu0 0.0
    %1264 = vmatpush1.msra.mxu0 0.0
    %1265 = vmatprep.subr.mxu0 0.0
    %1266 = vmatpush1.msra.mxu0 0.0
    %1267 = vmatprep.subr.mxu0 0.0
    %1268 = vmatpush1.msra.mxu0 0.0
    %1269 = vmatprep.subr.mxu0 0.0
    %1270 = vmatpush1.msra.mxu0 0.0
    %1271 = vmatprep.subr.mxu0 0.0
    %1272 = vmatpush1.msra.mxu0 0.0
    %1273 = vmatprep.subr.mxu0 0.0
    %1274 = vmatpush1.msra.mxu0 0.0
    %1275 = vmatprep.subr.mxu0 0.0
    %1276 = vmatpush1.msra.mxu0 0.0
    %1277 = vmatprep.mubr.f32.mxu0 0.0
    %1278 = vmatmul.mubr.f32.gmra.mrb[0].mxu0 %v1211
    %v1279 = vpop.f32.mrb[0].mxu0
    %v1280 = vadd.f32 %v289, %v1279
    %v1281 = vpop.f32.mrb[0].mxu0
    %v1282 = vadd.f32 %v293, %v1281
    %1283 = vdwg.mxu0
    %v1284 = vld [vmem:[%s0 + $0x5] sm:$0x1]
    %v1285 = vld [vmem:[%s0 + $0xd] sm:$0x1]
    %1287 = vset.pattern.permute.xlu0 0
    %1288 = vperm.xlu0 %1287, %v1284
    %v1289 = vpop.permute.xlu0 %1288
    %1292 = vset.pattern.permute.xlu0 0
    %1293 = vperm.xlu0 %1292, %v1285
    %v1294 = vpop.permute.xlu0 %1293
    %v1296 = vmul.f32 %v1289, %v129
    %v1297 = vmul.f32 %v1289, %v133
    %v1298 = vmul.f32 %v1294, %v129
    %v1299 = vmul.f32 %v1294, %v133
    %v1300 = vadd.f32 %v1296, %v144
    %v1301 = vadd.f32 %v1297, %v148
    %v1302 = vadd.f32 %v1298, %v144
    %v1303 = vadd.f32 %v1299, %v148
    %1304 = vmatprep.subr.mxu0 %v66
    %1305 = vmatpush1.msra.mxu0 %v65
    %1306 = vmatprep.subr.mxu0 %v68
    %1307 = vmatpush1.msra.mxu0 %v67
    %1308 = vmatprep.subr.mxu0 %v70
    %1309 = vmatpush1.msra.mxu0 %v69
    %1310 = vmatprep.subr.mxu0 %v72
    %1311 = vmatpush1.msra.mxu0 %v71
    %1312 = vmatprep.subr.mxu0 %v74
    %1313 = vmatpush1.msra.mxu0 %v73
    %1314 = vmatprep.subr.mxu0 %v76
    %1315 = vmatpush1.msra.mxu0 %v75
    %1316 = vmatprep.subr.mxu0 %v78
    %1317 = vmatpush1.msra.mxu0 %v77
    %1318 = vmatprep.subr.mxu0 %v80
    %1319 = vmatpush1.msra.mxu0 %v79
    %1320 = vmatprep.subr.mxu0 0.0
    %1321 = vmatpush1.msra.mxu0 0.0
    %1322 = vmatprep.subr.mxu0 0.0
    %1323 = vmatpush1.msra.mxu0 0.0
    %1324 = vmatprep.subr.mxu0 0.0
    %1325 = vmatpush1.msra.mxu0 0.0
    %1326 = vmatprep.subr.mxu0 0.0
    %1327 = vmatpush1.msra.mxu0 0.0
    %1328 = vmatprep.subr.mxu0 0.0
    %1329 = vmatpush1.msra.mxu0 0.0
    %1330 = vmatprep.subr.mxu0 0.0
    %1331 = vmatpush1.msra.mxu0 0.0
    %1332 = vmatprep.subr.mxu0 0.0
    %1333 = vmatpush1.msra.mxu0 0.0
    %1334 = vmatprep.subr.mxu0 0.0
    %1335 = vmatpush1.msra.mxu0 0.0
    %1336 = vmatprep.subr.mxu0 0.0
    %1337 = vmatpush1.msra.mxu0 0.0
    %1338 = vmatprep.subr.mxu0 0.0
    %1339 = vmatpush1.msra.mxu0 0.0
    %1340 = vmatprep.subr.mxu0 0.0
    %1341 = vmatpush1.msra.mxu0 0.0
    %1342 = vmatprep.subr.mxu0 0.0
    %1343 = vmatpush1.msra.mxu0 0.0
    %1344 = vmatprep.subr.mxu0 0.0
    %1345 = vmatpush1.msra.mxu0 0.0
    %1346 = vmatprep.subr.mxu0 0.0
    %1347 = vmatpush1.msra.mxu0 0.0
    %1348 = vmatprep.subr.mxu0 0.0
    %1349 = vmatpush1.msra.mxu0 0.0
    %1350 = vmatprep.subr.mxu0 0.0
    %1351 = vmatpush1.msra.mxu0 0.0
    %1352 = vmatprep.subr.mxu0 0.0
    %1353 = vmatpush1.msra.mxu0 0.0
    %1354 = vmatprep.subr.mxu0 0.0
    %1355 = vmatpush1.msra.mxu0 0.0
    %1356 = vmatprep.subr.mxu0 0.0
    %1357 = vmatpush1.msra.mxu0 0.0
    %1358 = vmatprep.subr.mxu0 0.0
    %1359 = vmatpush1.msra.mxu0 0.0
    %1360 = vmatprep.subr.mxu0 0.0
    %1361 = vmatpush1.msra.mxu0 0.0
    %1362 = vmatprep.subr.mxu0 0.0
    %1363 = vmatpush1.msra.mxu0 0.0
    %1364 = vmatprep.subr.mxu0 0.0
    %1365 = vmatpush1.msra.mxu0 0.0
    %1366 = vmatprep.subr.mxu0 0.0
    %1367 = vmatpush1.msra.mxu0 0.0
    %1368 = vmatprep.mubr.f32.mxu0 0.0
    %1369 = vmatmul.mubr.f32.gmra.mrb[0].mxu0 %v1211
    %v1370 = vpop.f32.mrb[0].mxu0
    %v1371 = vadd.f32 0.0, %v1370
    %v1372 = vpop.f32.mrb[0].mxu0
    %v1373 = vadd.f32 0.0, %v1372
    %1374 = vdwg.mxu0
    %v1377 = vrot.slane %v1280, 1
    %v1378 = vrot.slane %v1282, 1
    %v1383 = vadd.f32 %v1300, %v1280
    %v1384 = vadd.f32 %v1301, %v1282
    %v1385 = vadd.f32 %v1302, %v1377
    %v1386 = vadd.f32 %v1303, %v1378
    %v1388 = vrot.slane %v1371, 1
    %v1391 = vadd.f32 %v1383, %v1371
    %v1392 = vadd.f32 %v1385, %v1388
    %v1393 = vxor.u32 %v1391, 2147483648
    %v1394 = vxor.u32 %v1392, 2147483648
    %v1395 = vmul.f32 %v1393, 1.442695
    %v1396 = vpow.pop %v1395
    %v1397 = vmul.f32 %v1394, 1.442695
    %v1398 = vpow.pop %v1397
    %v1399 = vadd.f32 %v1396, 1.0
    %v1400 = vadd.f32 %v1398, 1.0
    %v1401 = vrcp.pop %v1399
    %v1402 = vmul.f32 1.0, %v1401
    %v1403 = vrcp.pop %v1400
    %v1404 = vmul.f32 1.0, %v1403
    %v1405 = vadd.f32 %v1373, %v256
    %v1407 = vrot.slane %v1405, 1
    %v1410 = vmul.f32 %v1402, %v1405
    %v1411 = vmul.f32 %v1404, %v1407
    %v1412 = vadd.f32 %v1384, %v1410
    %v1413 = vadd.f32 %v1386, %v1411
    %v1414 = vtanh.pop %v1412
    %v1415 = vtanh.pop %v1413
    %v1416 = vsub.f32 1.0, %v1402
    %v1417 = vsub.f32 1.0, %v1404
    %1420 = vrot.lane.b32.xlu0 %v1414, 64
    %v1421 = vpop.permute.xlu0 %1420
    %1422 = vrot.lane.b32.xlu0 %v1415, 64
    %v1423 = vpop.permute.xlu0 %1422
    %v1426 = vmul.f32 %v1416, %v1421
    %v1427 = vmul.f32 %v1417, %v1423
    %v1428 = vmul.f32 %v1402, %v1203
    %v1429 = vmul.f32 %v1404, %v1204
    %v1430 = vadd.f32 %v1426, %v1428
    %v1431 = vadd.f32 %v1427, %v1429
    %v1434 = vrot.slane %v1431, 7
    %v1435 = vsel %vm299, %v1434, %v1430
    %1436 = vrot.lane.b32.xlu0 %v1435, 64
    %v1437 = vpop.permute.xlu0 %1436
    %v1438 = vsel %vm155, %v1437, 0
    %1440 = vmatprep.subr.mxu0 %v84
    %1441 = vmatpush1.msra.mxu0 %v83
    %1442 = vmatprep.subr.mxu0 %v86
    %1443 = vmatpush1.msra.mxu0 %v85
    %1444 = vmatprep.subr.mxu0 %v88
    %1445 = vmatpush1.msra.mxu0 %v87
    %1446 = vmatprep.subr.mxu0 %v90
    %1447 = vmatpush1.msra.mxu0 %v89
    %1448 = vmatprep.subr.mxu0 %v92
    %1449 = vmatpush1.msra.mxu0 %v91
    %1450 = vmatprep.subr.mxu0 %v94
    %1451 = vmatpush1.msra.mxu0 %v93
    %1452 = vmatprep.subr.mxu0 %v96
    %1453 = vmatpush1.msra.mxu0 %v95
    %1454 = vmatprep.subr.mxu0 %v98
    %1455 = vmatpush1.msra.mxu0 %v97
    %1456 = vmatprep.subr.mxu0 0.0
    %1457 = vmatpush1.msra.mxu0 0.0
    %1458 = vmatprep.subr.mxu0 0.0
    %1459 = vmatpush1.msra.mxu0 0.0
    %1460 = vmatprep.subr.mxu0 0.0
    %1461 = vmatpush1.msra.mxu0 0.0
    %1462 = vmatprep.subr.mxu0 0.0
    %1463 = vmatpush1.msra.mxu0 0.0
    %1464 = vmatprep.subr.mxu0 0.0
    %1465 = vmatpush1.msra.mxu0 0.0
    %1466 = vmatprep.subr.mxu0 0.0
    %1467 = vmatpush1.msra.mxu0 0.0
    %1468 = vmatprep.subr.mxu0 0.0
    %1469 = vmatpush1.msra.mxu0 0.0
    %1470 = vmatprep.subr.mxu0 0.0
    %1471 = vmatpush1.msra.mxu0 0.0
    %1472 = vmatprep.subr.mxu0 0.0
    %1473 = vmatpush1.msra.mxu0 0.0
    %1474 = vmatprep.subr.mxu0 0.0
    %1475 = vmatpush1.msra.mxu0 0.0
    %1476 = vmatprep.subr.mxu0 0.0
    %1477 = vmatpush1.msra.mxu0 0.0
    %1478 = vmatprep.subr.mxu0 0.0
    %1479 = vmatpush1.msra.mxu0 0.0
    %1480 = vmatprep.subr.mxu0 0.0
    %1481 = vmatpush1.msra.mxu0 0.0
    %1482 = vmatprep.subr.mxu0 0.0
    %1483 = vmatpush1.msra.mxu0 0.0
    %1484 = vmatprep.subr.mxu0 0.0
    %1485 = vmatpush1.msra.mxu0 0.0
    %1486 = vmatprep.subr.mxu0 0.0
    %1487 = vmatpush1.msra.mxu0 0.0
    %1488 = vmatprep.subr.mxu0 0.0
    %1489 = vmatpush1.msra.mxu0 0.0
    %1490 = vmatprep.subr.mxu0 0.0
    %1491 = vmatpush1.msra.mxu0 0.0
    %1492 = vmatprep.subr.mxu0 0.0
    %1493 = vmatpush1.msra.mxu0 0.0
    %1494 = vmatprep.subr.mxu0 0.0
    %1495 = vmatpush1.msra.mxu0 0.0
    %1496 = vmatprep.subr.mxu0 0.0
    %1497 = vmatpush1.msra.mxu0 0.0
    %1498 = vmatprep.subr.mxu0 0.0
    %1499 = vmatpush1.msra.mxu0 0.0
    %1500 = vmatprep.subr.mxu0 0.0
    %1501 = vmatpush1.msra.mxu0 0.0
    %1502 = vmatprep.subr.mxu0 0.0
    %1503 = vmatpush1.msra.mxu0 0.0
    %1504 = vmatprep.mubr.f32.mxu0 0.0
    %1505 = vmatmul.mubr.f32.gmra.mrb[0].mxu0 %v1438
    %v1506 = vpop.f32.mrb[0].mxu0
    %v1507 = vadd.f32 %v289, %v1506
    %v1508 = vpop.f32.mrb[0].mxu0
    %v1509 = vadd.f32 %v293, %v1508
    %1510 = vdwg.mxu0
    %v1511 = vld [vmem:[%s0 + $0x6] sm:$0x1]
    %v1512 = vld [vmem:[%s0 + $0xe] sm:$0x1]
    %1514 = vset.pattern.permute.xlu0 0
    %1515 = vperm.xlu0 %1514, %v1511
    %v1516 = vpop.permute.xlu0 %1515
    %1519 = vset.pattern.permute.xlu0 0
    %1520 = vperm.xlu0 %1519, %v1512
    %v1521 = vpop.permute.xlu0 %1520
    %v1523 = vmul.f32 %v1516, %v129
    %v1524 = vmul.f32 %v1516, %v133
    %v1525 = vmul.f32 %v1521, %v129
    %v1526 = vmul.f32 %v1521, %v133
    %v1527 = vadd.f32 %v1523, %v144
    %v1528 = vadd.f32 %v1524, %v148
    %v1529 = vadd.f32 %v1525, %v144
    %v1530 = vadd.f32 %v1526, %v148
    %1531 = vmatprep.subr.mxu0 %v66
    %1532 = vmatpush1.msra.mxu0 %v65
    %1533 = vmatprep.subr.mxu0 %v68
    %1534 = vmatpush1.msra.mxu0 %v67
    %1535 = vmatprep.subr.mxu0 %v70
    %1536 = vmatpush1.msra.mxu0 %v69
    %1537 = vmatprep.subr.mxu0 %v72
    %1538 = vmatpush1.msra.mxu0 %v71
    %1539 = vmatprep.subr.mxu0 %v74
    %1540 = vmatpush1.msra.mxu0 %v73
    %1541 = vmatprep.subr.mxu0 %v76
    %1542 = vmatpush1.msra.mxu0 %v75
    %1543 = vmatprep.subr.mxu0 %v78
    %1544 = vmatpush1.msra.mxu0 %v77
    %1545 = vmatprep.subr.mxu0 %v80
    %1546 = vmatpush1.msra.mxu0 %v79
    %1547 = vmatprep.subr.mxu0 0.0
    %1548 = vmatpush1.msra.mxu0 0.0
    %1549 = vmatprep.subr.mxu0 0.0
    %1550 = vmatpush1.msra.mxu0 0.0
    %1551 = vmatprep.subr.mxu0 0.0
    %1552 = vmatpush1.msra.mxu0 0.0
    %1553 = vmatprep.subr.mxu0 0.0
    %1554 = vmatpush1.msra.mxu0 0.0
    %1555 = vmatprep.subr.mxu0 0.0
    %1556 = vmatpush1.msra.mxu0 0.0
    %1557 = vmatprep.subr.mxu0 0.0
    %1558 = vmatpush1.msra.mxu0 0.0
    %1559 = vmatprep.subr.mxu0 0.0
    %1560 = vmatpush1.msra.mxu0 0.0
    %1561 = vmatprep.subr.mxu0 0.0
    %1562 = vmatpush1.msra.mxu0 0.0
    %1563 = vmatprep.subr.mxu0 0.0
    %1564 = vmatpush1.msra.mxu0 0.0
    %1565 = vmatprep.subr.mxu0 0.0
    %1566 = vmatpush1.msra.mxu0 0.0
    %1567 = vmatprep.subr.mxu0 0.0
    %1568 = vmatpush1.msra.mxu0 0.0
    %1569 = vmatprep.subr.mxu0 0.0
    %1570 = vmatpush1.msra.mxu0 0.0
    %1571 = vmatprep.subr.mxu0 0.0
    %1572 = vmatpush1.msra.mxu0 0.0
    %1573 = vmatprep.subr.mxu0 0.0
    %1574 = vmatpush1.msra.mxu0 0.0
    %1575 = vmatprep.subr.mxu0 0.0
    %1576 = vmatpush1.msra.mxu0 0.0
    %1577 = vmatprep.subr.mxu0 0.0
    %1578 = vmatpush1.msra.mxu0 0.0
    %1579 = vmatprep.subr.mxu0 0.0
    %1580 = vmatpush1.msra.mxu0 0.0
    %1581 = vmatprep.subr.mxu0 0.0
    %1582 = vmatpush1.msra.mxu0 0.0
    %1583 = vmatprep.subr.mxu0 0.0
    %1584 = vmatpush1.msra.mxu0 0.0
    %1585 = vmatprep.subr.mxu0 0.0
    %1586 = vmatpush1.msra.mxu0 0.0
    %1587 = vmatprep.subr.mxu0 0.0
    %1588 = vmatpush1.msra.mxu0 0.0
    %1589 = vmatprep.subr.mxu0 0.0
    %1590 = vmatpush1.msra.mxu0 0.0
    %1591 = vmatprep.subr.mxu0 0.0
    %1592 = vmatpush1.msra.mxu0 0.0
    %1593 = vmatprep.subr.mxu0 0.0
    %1594 = vmatpush1.msra.mxu0 0.0
    %1595 = vmatprep.mubr.f32.mxu0 0.0
    %1596 = vmatmul.mubr.f32.gmra.mrb[0].mxu0 %v1438
    %v1597 = vpop.f32.mrb[0].mxu0
    %v1598 = vadd.f32 0.0, %v1597
    %v1599 = vpop.f32.mrb[0].mxu0
    %v1600 = vadd.f32 0.0, %v1599
    %1601 = vdwg.mxu0
    %v1604 = vrot.slane %v1507, 1
    %v1605 = vrot.slane %v1509, 1
    %v1610 = vadd.f32 %v1527, %v1507
    %v1611 = vadd.f32 %v1528, %v1509
    %v1612 = vadd.f32 %v1529, %v1604
    %v1613 = vadd.f32 %v1530, %v1605
    %v1615 = vrot.slane %v1598, 1
    %v1618 = vadd.f32 %v1610, %v1598
    %v1619 = vadd.f32 %v1612, %v1615
    %v1620 = vxor.u32 %v1618, 2147483648
    %v1621 = vxor.u32 %v1619, 2147483648
    %v1622 = vmul.f32 %v1620, 1.442695
    %v1623 = vpow.pop %v1622
    %v1624 = vmul.f32 %v1621, 1.442695
    %v1625 = vpow.pop %v1624
    %v1626 = vadd.f32 %v1623, 1.0
    %v1627 = vadd.f32 %v1625, 1.0
    %v1628 = vrcp.pop %v1626
    %v1629 = vmul.f32 1.0, %v1628
    %v1630 = vrcp.pop %v1627
    %v1631 = vmul.f32 1.0, %v1630
    %v1632 = vadd.f32 %v1600, %v256
    %v1634 = vrot.slane %v1632, 1
    %v1637 = vmul.f32 %v1629, %v1632
    %v1638 = vmul.f32 %v1631, %v1634
    %v1639 = vadd.f32 %v1611, %v1637
    %v1640 = vadd.f32 %v1613, %v1638
    %v1641 = vtanh.pop %v1639
    %v1642 = vtanh.pop %v1640
    %v1643 = vsub.f32 1.0, %v1629
    %v1644 = vsub.f32 1.0, %v1631
    %1647 = vrot.lane.b32.xlu0 %v1641, 64
    %v1648 = vpop.permute.xlu0 %1647
    %1649 = vrot.lane.b32.xlu0 %v1642, 64
    %v1650 = vpop.permute.xlu0 %1649
    %v1653 = vmul.f32 %v1643, %v1648
    %v1654 = vmul.f32 %v1644, %v1650
    %v1655 = vmul.f32 %v1629, %v1430
    %v1656 = vmul.f32 %v1631, %v1431
    %v1657 = vadd.f32 %v1653, %v1655
    %v1658 = vadd.f32 %v1654, %v1656
    %v1661 = vrot.slane %v1658, 7
    %v1662 = vsel %vm299, %v1661, %v1657
    %1663 = vrot.lane.b32.xlu0 %v1662, 64
    %v1664 = vpop.permute.xlu0 %1663
    %v1665 = vsel %vm155, %v1664, 0
    %1667 = vmatprep.subr.mxu0 %v84
    %1668 = vmatpush1.msra.mxu0 %v83
    %1669 = vmatprep.subr.mxu0 %v86
    %1670 = vmatpush1.msra.mxu0 %v85
    %1671 = vmatprep.subr.mxu0 %v88
    %1672 = vmatpush1.msra.mxu0 %v87
    %1673 = vmatprep.subr.mxu0 %v90
    %1674 = vmatpush1.msra.mxu0 %v89
    %1675 = vmatprep.subr.mxu0 %v92
    %1676 = vmatpush1.msra.mxu0 %v91
    %1677 = vmatprep.subr.mxu0 %v94
    %1678 = vmatpush1.msra.mxu0 %v93
    %1679 = vmatprep.subr.mxu0 %v96
    %1680 = vmatpush1.msra.mxu0 %v95
    %1681 = vmatprep.subr.mxu0 %v98
    %1682 = vmatpush1.msra.mxu0 %v97
    %1683 = vmatprep.subr.mxu0 0.0
    %1684 = vmatpush1.msra.mxu0 0.0
    %1685 = vmatprep.subr.mxu0 0.0
    %1686 = vmatpush1.msra.mxu0 0.0
    %1687 = vmatprep.subr.mxu0 0.0
    %1688 = vmatpush1.msra.mxu0 0.0
    %1689 = vmatprep.subr.mxu0 0.0
    %1690 = vmatpush1.msra.mxu0 0.0
    %1691 = vmatprep.subr.mxu0 0.0
    %1692 = vmatpush1.msra.mxu0 0.0
    %1693 = vmatprep.subr.mxu0 0.0
    %1694 = vmatpush1.msra.mxu0 0.0
    %1695 = vmatprep.subr.mxu0 0.0
    %1696 = vmatpush1.msra.mxu0 0.0
    %1697 = vmatprep.subr.mxu0 0.0
    %1698 = vmatpush1.msra.mxu0 0.0
    %1699 = vmatprep.subr.mxu0 0.0
    %1700 = vmatpush1.msra.mxu0 0.0
    %1701 = vmatprep.subr.mxu0 0.0
    %1702 = vmatpush1.msra.mxu0 0.0
    %1703 = vmatprep.subr.mxu0 0.0
    %1704 = vmatpush1.msra.mxu0 0.0
    %1705 = vmatprep.subr.mxu0 0.0
    %1706 = vmatpush1.msra.mxu0 0.0
    %1707 = vmatprep.subr.mxu0 0.0
    %1708 = vmatpush1.msra.mxu0 0.0
    %1709 = vmatprep.subr.mxu0 0.0
    %1710 = vmatpush1.msra.mxu0 0.0
    %1711 = vmatprep.subr.mxu0 0.0
    %1712 = vmatpush1.msra.mxu0 0.0
    %1713 = vmatprep.subr.mxu0 0.0
    %1714 = vmatpush1.msra.mxu0 0.0
    %1715 = vmatprep.subr.mxu0 0.0
    %1716 = vmatpush1.msra.mxu0 0.0
    %1717 = vmatprep.subr.mxu0 0.0
    %1718 = vmatpush1.msra.mxu0 0.0
    %1719 = vmatprep.subr.mxu0 0.0
    %1720 = vmatpush1.msra.mxu0 0.0
    %1721 = vmatprep.subr.mxu0 0.0
    %1722 = vmatpush1.msra.mxu0 0.0
    %1723 = vmatprep.subr.mxu0 0.0
    %1724 = vmatpush1.msra.mxu0 0.0
    %1725 = vmatprep.subr.mxu0 0.0
    %1726 = vmatpush1.msra.mxu0 0.0
    %1727 = vmatprep.subr.mxu0 0.0
    %1728 = vmatpush1.msra.mxu0 0.0
    %1729 = vmatprep.subr.mxu0 0.0
    %1730 = vmatpush1.msra.mxu0 0.0
    %1731 = vmatprep.mubr.f32.mxu0 0.0
    %1732 = vmatmul.mubr.f32.gmra.mrb[0].mxu0 %v1665
    %v1733 = vpop.f32.mrb[0].mxu0
    %v1734 = vadd.f32 %v289, %v1733
    %v1735 = vpop.f32.mrb[0].mxu0
    %v1736 = vadd.f32 %v293, %v1735
    %1737 = vdwg.mxu0
    %v1738 = vld [vmem:[%s0 + $0x7] sm:$0x1]
    %v1739 = vld [vmem:[%s0 + $0xf] sm:$0x1]
    %1741 = vset.pattern.permute.xlu0 0
    %1742 = vperm.xlu0 %1741, %v1738
    %v1743 = vpop.permute.xlu0 %1742
    %1746 = vset.pattern.permute.xlu0 0
    %1747 = vperm.xlu0 %1746, %v1739
    %v1748 = vpop.permute.xlu0 %1747
    %v1750 = vmul.f32 %v1743, %v129
    %v1751 = vmul.f32 %v1743, %v133
    %v1752 = vmul.f32 %v1748, %v129
    %v1753 = vmul.f32 %v1748, %v133
    %v1754 = vadd.f32 %v1750, %v144
    %v1755 = vadd.f32 %v1751, %v148
    %v1756 = vadd.f32 %v1752, %v144
    %v1757 = vadd.f32 %v1753, %v148
    %1758 = vmatprep.subr.mxu0 %v66
    %1759 = vmatpush1.msra.mxu0 %v65
    %1760 = vmatprep.subr.mxu0 %v68
    %1761 = vmatpush1.msra.mxu0 %v67
    %1762 = vmatprep.subr.mxu0 %v70
    %1763 = vmatpush1.msra.mxu0 %v69
    %1764 = vmatprep.subr.mxu0 %v72
    %1765 = vmatpush1.msra.mxu0 %v71
    %1766 = vmatprep.subr.mxu0 %v74
    %1767 = vmatpush1.msra.mxu0 %v73
    %1768 = vmatprep.subr.mxu0 %v76
    %1769 = vmatpush1.msra.mxu0 %v75
    %1770 = vmatprep.subr.mxu0 %v78
    %1771 = vmatpush1.msra.mxu0 %v77
    %1772 = vmatprep.subr.mxu0 %v80
    %1773 = vmatpush1.msra.mxu0 %v79
    %1774 = vmatprep.subr.mxu0 0.0
    %1775 = vmatpush1.msra.mxu0 0.0
    %1776 = vmatprep.subr.mxu0 0.0
    %1777 = vmatpush1.msra.mxu0 0.0
    %1778 = vmatprep.subr.mxu0 0.0
    %1779 = vmatpush1.msra.mxu0 0.0
    %1780 = vmatprep.subr.mxu0 0.0
    %1781 = vmatpush1.msra.mxu0 0.0
    %1782 = vmatprep.subr.mxu0 0.0
    %1783 = vmatpush1.msra.mxu0 0.0
    %1784 = vmatprep.subr.mxu0 0.0
    %1785 = vmatpush1.msra.mxu0 0.0
    %1786 = vmatprep.subr.mxu0 0.0
    %1787 = vmatpush1.msra.mxu0 0.0
    %1788 = vmatprep.subr.mxu0 0.0
    %1789 = vmatpush1.msra.mxu0 0.0
    %1790 = vmatprep.subr.mxu0 0.0
    %1791 = vmatpush1.msra.mxu0 0.0
    %1792 = vmatprep.subr.mxu0 0.0
    %1793 = vmatpush1.msra.mxu0 0.0
    %1794 = vmatprep.subr.mxu0 0.0
    %1795 = vmatpush1.msra.mxu0 0.0
    %1796 = vmatprep.subr.mxu0 0.0
    %1797 = vmatpush1.msra.mxu0 0.0
    %1798 = vmatprep.subr.mxu0 0.0
    %1799 = vmatpush1.msra.mxu0 0.0
    %1800 = vmatprep.subr.mxu0 0.0
    %1801 = vmatpush1.msra.mxu0 0.0
    %1802 = vmatprep.subr.mxu0 0.0
    %1803 = vmatpush1.msra.mxu0 0.0
    %1804 = vmatprep.subr.mxu0 0.0
    %1805 = vmatpush1.msra.mxu0 0.0
    %1806 = vmatprep.subr.mxu0 0.0
    %1807 = vmatpush1.msra.mxu0 0.0
    %1808 = vmatprep.subr.mxu0 0.0
    %1809 = vmatpush1.msra.mxu0 0.0
    %1810 = vmatprep.subr.mxu0 0.0
    %1811 = vmatpush1.msra.mxu0 0.0
    %1812 = vmatprep.subr.mxu0 0.0
    %1813 = vmatpush1.msra.mxu0 0.0
    %1814 = vmatprep.subr.mxu0 0.0
    %1815 = vmatpush1.msra.mxu0 0.0
    %1816 = vmatprep.subr.mxu0 0.0
    %1817 = vmatpush1.msra.mxu0 0.0
    %1818 = vmatprep.subr.mxu0 0.0
    %1819 = vmatpush1.msra.mxu0 0.0
    %1820 = vmatprep.subr.mxu0 0.0
    %1821 = vmatpush1.msra.mxu0 0.0
    %1822 = vmatprep.mubr.f32.mxu0 0.0
    %1823 = vmatmul.mubr.f32.gmra.mrb[0].mxu0 %v1665
    %v1824 = vpop.f32.mrb[0].mxu0
    %v1825 = vadd.f32 0.0, %v1824
    %v1826 = vpop.f32.mrb[0].mxu0
    %v1827 = vadd.f32 0.0, %v1826
    %1828 = vdwg.mxu0
    %v1831 = vrot.slane %v1734, 1
    %v1832 = vrot.slane %v1736, 1
    %v1837 = vadd.f32 %v1754, %v1734
    %v1838 = vadd.f32 %v1755, %v1736
    %v1839 = vadd.f32 %v1756, %v1831
    %v1840 = vadd.f32 %v1757, %v1832
    %v1842 = vrot.slane %v1825, 1
    %v1845 = vadd.f32 %v1837, %v1825
    %v1846 = vadd.f32 %v1839, %v1842
    %v1847 = vxor.u32 %v1845, 2147483648
    %v1848 = vxor.u32 %v1846, 2147483648
    %v1849 = vmul.f32 %v1847, 1.442695
    %v1850 = vpow.pop %v1849
    %v1851 = vmul.f32 %v1848, 1.442695
    %v1852 = vpow.pop %v1851
    %v1853 = vadd.f32 %v1850, 1.0
    %v1854 = vadd.f32 %v1852, 1.0
    %v1855 = vrcp.pop %v1853
    %v1856 = vmul.f32 1.0, %v1855
    %v1857 = vrcp.pop %v1854
    %v1858 = vmul.f32 1.0, %v1857
    %v1859 = vadd.f32 %v1827, %v256
    %v1861 = vrot.slane %v1859, 1
    %v1864 = vmul.f32 %v1856, %v1859
    %v1865 = vmul.f32 %v1858, %v1861
    %v1866 = vadd.f32 %v1838, %v1864
    %v1867 = vadd.f32 %v1840, %v1865
    %v1868 = vtanh.pop %v1866
    %v1869 = vtanh.pop %v1867
    %v1870 = vsub.f32 1.0, %v1856
    %v1871 = vsub.f32 1.0, %v1858
    %1874 = vrot.lane.b32.xlu0 %v1868, 64
    %v1875 = vpop.permute.xlu0 %1874
    %1876 = vrot.lane.b32.xlu0 %v1869, 64
    %v1877 = vpop.permute.xlu0 %1876
    %v1880 = vmul.f32 %v1870, %v1875
    %v1881 = vmul.f32 %v1871, %v1877
    %v1882 = vmul.f32 %v1856, %v1657
    %v1883 = vmul.f32 %v1858, %v1658
    %v1884 = vadd.f32 %v1880, %v1882
    %v1885 = vadd.f32 %v1881, %v1883
    %v1888 = vrot.slane %v1885, 7
    %v1889 = vsel %vm299, %v1888, %v1884
    %1890 = vrot.lane.b32.xlu0 %v1889, 64
    %v1891 = vpop.permute.xlu0 %1890
    %v1892 = vsel %vm155, %v1891, 0
    %1894 = vmatprep.subr.mxu0 %v84
    %1895 = vmatpush1.msra.mxu0 %v83
    %1896 = vmatprep.subr.mxu0 %v86
    %1897 = vmatpush1.msra.mxu0 %v85
    %1898 = vmatprep.subr.mxu0 %v88
    %1899 = vmatpush1.msra.mxu0 %v87
    %1900 = vmatprep.subr.mxu0 %v90
    %1901 = vmatpush1.msra.mxu0 %v89
    %1902 = vmatprep.subr.mxu0 %v92
    %1903 = vmatpush1.msra.mxu0 %v91
    %1904 = vmatprep.subr.mxu0 %v94
    %1905 = vmatpush1.msra.mxu0 %v93
    %1906 = vmatprep.subr.mxu0 %v96
    %1907 = vmatpush1.msra.mxu0 %v95
    %1908 = vmatprep.subr.mxu0 %v98
    %1909 = vmatpush1.msra.mxu0 %v97
    %1910 = vmatprep.subr.mxu0 0.0
    %1911 = vmatpush1.msra.mxu0 0.0
    %1912 = vmatprep.subr.mxu0 0.0
    %1913 = vmatpush1.msra.mxu0 0.0
    %1914 = vmatprep.subr.mxu0 0.0
    %1915 = vmatpush1.msra.mxu0 0.0
    %1916 = vmatprep.subr.mxu0 0.0
    %1917 = vmatpush1.msra.mxu0 0.0
    %1918 = vmatprep.subr.mxu0 0.0
    %1919 = vmatpush1.msra.mxu0 0.0
    %1920 = vmatprep.subr.mxu0 0.0
    %1921 = vmatpush1.msra.mxu0 0.0
    %1922 = vmatprep.subr.mxu0 0.0
    %1923 = vmatpush1.msra.mxu0 0.0
    %1924 = vmatprep.subr.mxu0 0.0
    %1925 = vmatpush1.msra.mxu0 0.0
    %1926 = vmatprep.subr.mxu0 0.0
    %1927 = vmatpush1.msra.mxu0 0.0
    %1928 = vmatprep.subr.mxu0 0.0
    %1929 = vmatpush1.msra.mxu0 0.0
    %1930 = vmatprep.subr.mxu0 0.0
    %1931 = vmatpush1.msra.mxu0 0.0
    %1932 = vmatprep.subr.mxu0 0.0
    %1933 = vmatpush1.msra.mxu0 0.0
    %1934 = vmatprep.subr.mxu0 0.0
    %1935 = vmatpush1.msra.mxu0 0.0
    %1936 = vmatprep.subr.mxu0 0.0
    %1937 = vmatpush1.msra.mxu0 0.0
    %1938 = vmatprep.subr.mxu0 0.0
    %1939 = vmatpush1.msra.mxu0 0.0
    %1940 = vmatprep.subr.mxu0 0.0
    %1941 = vmatpush1.msra.mxu0 0.0
    %1942 = vmatprep.subr.mxu0 0.0
    %1943 = vmatpush1.msra.mxu0 0.0
    %1944 = vmatprep.subr.mxu0 0.0
    %1945 = vmatpush1.msra.mxu0 0.0
    %1946 = vmatprep.subr.mxu0 0.0
    %1947 = vmatpush1.msra.mxu0 0.0
    %1948 = vmatprep.subr.mxu0 0.0
    %1949 = vmatpush1.msra.mxu0 0.0
    %1950 = vmatprep.subr.mxu0 0.0
    %1951 = vmatpush1.msra.mxu0 0.0
    %1952 = vmatprep.subr.mxu0 0.0
    %1953 = vmatpush1.msra.mxu0 0.0
    %1954 = vmatprep.subr.mxu0 0.0
    %1955 = vmatpush1.msra.mxu0 0.0
    %1956 = vmatprep.subr.mxu0 0.0
    %1957 = vmatpush1.msra.mxu0 0.0
    %1958 = vmatprep.mubr.f32.mxu0 0.0
    %1959 = vmatmul.mubr.f32.gmra.mrb[0].mxu0 %v1892
    %v1960 = vpop.f32.mrb[0].mxu0
    %v1961 = vadd.f32 %v289, %v1960
    %v1962 = vpop.f32.mrb[0].mxu0
    %v1963 = vadd.f32 %v293, %v1962
    %1964 = vdwg.mxu0
    %1965 = vmatprep.subr.mxu0 %v66
    %1966 = vmatpush1.msra.mxu0 %v65
    %1967 = vmatprep.subr.mxu0 %v68
    %1968 = vmatpush1.msra.mxu0 %v67
    %1969 = vmatprep.subr.mxu0 %v70
    %1970 = vmatpush1.msra.mxu0 %v69
    %1971 = vmatprep.subr.mxu0 %v72
    %1972 = vmatpush1.msra.mxu0 %v71
    %1973 = vmatprep.subr.mxu0 %v74
    %1974 = vmatpush1.msra.mxu0 %v73
    %1975 = vmatprep.subr.mxu0 %v76
    %1976 = vmatpush1.msra.mxu0 %v75
    %1977 = vmatprep.subr.mxu0 %v78
    %1978 = vmatpush1.msra.mxu0 %v77
    %1979 = vmatprep.subr.mxu0 %v80
    %1980 = vmatpush1.msra.mxu0 %v79
    %1981 = vmatprep.subr.mxu0 0.0
    %1982 = vmatpush1.msra.mxu0 0.0
    %1983 = vmatprep.subr.mxu0 0.0
    %1984 = vmatpush1.msra.mxu0 0.0
    %1985 = vmatprep.subr.mxu0 0.0
    %1986 = vmatpush1.msra.mxu0 0.0
    %1987 = vmatprep.subr.mxu0 0.0
    %1988 = vmatpush1.msra.mxu0 0.0
    %1989 = vmatprep.subr.mxu0 0.0
    %1990 = vmatpush1.msra.mxu0 0.0
    %1991 = vmatprep.subr.mxu0 0.0
    %1992 = vmatpush1.msra.mxu0 0.0
    %1993 = vmatprep.subr.mxu0 0.0
    %1994 = vmatpush1.msra.mxu0 0.0
    %1995 = vmatprep.subr.mxu0 0.0
    %1996 = vmatpush1.msra.mxu0 0.0
    %1997 = vmatprep.subr.mxu0 0.0
    %1998 = vmatpush1.msra.mxu0 0.0
    %1999 = vmatprep.subr.mxu0 0.0
    %2000 = vmatpush1.msra.mxu0 0.0
    %2001 = vmatprep.subr.mxu0 0.0
    %2002 = vmatpush1.msra.mxu0 0.0
    %2003 = vmatprep.subr.mxu0 0.0
    %2004 = vmatpush1.msra.mxu0 0.0
    %2005 = vmatprep.subr.mxu0 0.0
    %2006 = vmatpush1.msra.mxu0 0.0
    %2007 = vmatprep.subr.mxu0 0.0
    %2008 = vmatpush1.msra.mxu0 0.0
    %2009 = vmatprep.subr.mxu0 0.0
    %2010 = vmatpush1.msra.mxu0 0.0
    %2011 = vmatprep.subr.mxu0 0.0
    %2012 = vmatpush1.msra.mxu0 0.0
    %2013 = vmatprep.subr.mxu0 0.0
    %2014 = vmatpush1.msra.mxu0 0.0
    %2015 = vmatprep.subr.mxu0 0.0
    %2016 = vmatpush1.msra.mxu0 0.0
    %2017 = vmatprep.subr.mxu0 0.0
    %2018 = vmatpush1.msra.mxu0 0.0
    %2019 = vmatprep.subr.mxu0 0.0
    %2020 = vmatpush1.msra.mxu0 0.0
    %2021 = vmatprep.subr.mxu0 0.0
    %2022 = vmatpush1.msra.mxu0 0.0
    %2023 = vmatprep.subr.mxu0 0.0
    %2024 = vmatpush1.msra.mxu0 0.0
    %2025 = vmatprep.subr.mxu0 0.0
    %2026 = vmatpush1.msra.mxu0 0.0
    %2027 = vmatprep.subr.mxu0 0.0
    %2028 = vmatpush1.msra.mxu0 0.0
    %2029 = vmatprep.mubr.f32.mxu0 0.0
    %2030 = vmatmul.mubr.f32.gmra.mrb[0].mxu0 %v1892
    %v2031 = vpop.f32.mrb[0].mxu0
    %v2032 = vadd.f32 0.0, %v2031
    %v2033 = vpop.f32.mrb[0].mxu0
    %v2034 = vadd.f32 0.0, %v2033
    %2035 = vdwg.mxu0
    %v2036 = vadd.f32 %v1961, 0.0
    %v2037 = vadd.f32 %v1963, 0.0
    %v2038 = vadd.f32 %v2036, %v2032
    %v2039 = vxor.u32 %v2038, 2147483648
    %v2040 = vmul.f32 %v2039, 1.442695
    %v2041 = vpow.pop %v2040
    %v2042 = vadd.f32 %v2041, 1.0
    %v2043 = vrcp.pop %v2042
    %v2044 = vmul.f32 1.0, %v2043
    %v2045 = vadd.f32 %v2034, %v256
    %v2046 = vmul.f32 %v2044, %v2045
    %v2047 = vadd.f32 %v2037, %v2046
    %v2048 = vtanh.pop %v2047
    %v2049 = vsub.f32 1.0, %v2044
    %2051 = vrot.lane.b32.xlu0 %v2048, 64
    %v2052 = vpop.permute.xlu0 %2051
    %v2054 = vmul.f32 %v2049, %v2052
    %v2056 = vmul.f32 %v2044, %v1889
    %v2057 = vadd.f32 %v2054, %v2056
    %v2058 = vld [vmem:[%s8] sm:$0xff]
    %v2059 = vld [vmem:[%s8 + $0x8] sm:$0xff]
    %v2060 = vld [vmem:[%s8 + $0x10] sm:$0xff]
    %v2061 = vld [vmem:[%s8 + $0x18] sm:$0xff]
    %v2062 = vld [vmem:[#allocation2] sm:$0x1]
    %v2064 = vlaneseq
    %v2065 = vshrl.u32 %v2064, 7
    %v2066 = vsub.s32 0, %v2065
    %v2067 = vrot.slane %v2062, %v2066
    %2070 = vrot.lane.b32.xlu0 %v2057, 32
    %v2071 = vpop.permute.xlu0 %2070
    %vm2072 = vcmask 261120
    %v2073 = vsel %vm2072, %v2071, 0
    %2075 = vmatprep.subr.mxu0 0.0
    %2076 = vmatpush1.msra.mxu0 %v2058
    %2077 = vmatprep.subr.mxu0 0.0
    %2078 = vmatpush1.msra.mxu0 %v2059
    %2079 = vmatprep.subr.mxu0 0.0
    %2080 = vmatpush1.msra.mxu0 %v2060
    %2081 = vmatprep.subr.mxu0 0.0
    %2082 = vmatpush1.msra.mxu0 %v2061
    %2083 = vmatprep.subr.mxu0 0.0
    %2084 = vmatpush1.msra.mxu0 0.0
    %2085 = vmatprep.subr.mxu0 0.0
    %2086 = vmatpush1.msra.mxu0 0.0
    %2087 = vmatprep.subr.mxu0 0.0
    %2088 = vmatpush1.msra.mxu0 0.0
    %2089 = vmatprep.subr.mxu0 0.0
    %2090 = vmatpush1.msra.mxu0 0.0
    %2091 = vmatprep.subr.mxu0 0.0
    %2092 = vmatpush1.msra.mxu0 0.0
    %2093 = vmatprep.subr.mxu0 0.0
    %2094 = vmatpush1.msra.mxu0 0.0
    %2095 = vmatprep.subr.mxu0 0.0
    %2096 = vmatpush1.msra.mxu0 0.0
    %2097 = vmatprep.subr.mxu0 0.0
    %2098 = vmatpush1.msra.mxu0 0.0
    %2099 = vmatprep.subr.mxu0 0.0
    %2100 = vmatpush1.msra.mxu0 0.0
    %2101 = vmatprep.subr.mxu0 0.0
    %2102 = vmatpush1.msra.mxu0 0.0
    %2103 = vmatprep.subr.mxu0 0.0
    %2104 = vmatpush1.msra.mxu0 0.0
    %2105 = vmatprep.subr.mxu0 0.0
    %2106 = vmatpush1.msra.mxu0 0.0
    %2107 = vmatprep.subr.mxu0 0.0
    %2108 = vmatpush1.msra.mxu0 0.0
    %2109 = vmatprep.subr.mxu0 0.0
    %2110 = vmatpush1.msra.mxu0 0.0
    %2111 = vmatprep.subr.mxu0 0.0
    %2112 = vmatpush1.msra.mxu0 0.0
    %2113 = vmatprep.subr.mxu0 0.0
    %2114 = vmatpush1.msra.mxu0 0.0
    %2115 = vmatprep.subr.mxu0 0.0
    %2116 = vmatpush1.msra.mxu0 0.0
    %2117 = vmatprep.subr.mxu0 0.0
    %2118 = vmatpush1.msra.mxu0 0.0
    %2119 = vmatprep.subr.mxu0 0.0
    %2120 = vmatpush1.msra.mxu0 0.0
    %2121 = vmatprep.subr.mxu0 0.0
    %2122 = vmatpush1.msra.mxu0 0.0
    %2123 = vmatprep.subr.mxu0 0.0
    %2124 = vmatpush1.msra.mxu0 0.0
    %2125 = vmatprep.subr.mxu0 0.0
    %2126 = vmatpush1.msra.mxu0 0.0
    %2127 = vmatprep.subr.mxu0 0.0
    %2128 = vmatpush1.msra.mxu0 0.0
    %2129 = vmatprep.subr.mxu0 0.0
    %2130 = vmatpush1.msra.mxu0 0.0
    %2131 = vmatprep.subr.mxu0 0.0
    %2132 = vmatpush1.msra.mxu0 0.0
    %2133 = vmatprep.subr.mxu0 0.0
    %2134 = vmatpush1.msra.mxu0 0.0
    %2135 = vmatprep.subr.mxu0 0.0
    %2136 = vmatpush1.msra.mxu0 0.0
    %2137 = vmatprep.subr.mxu0 0.0
    %2138 = vmatpush1.msra.mxu0 0.0
    %2139 = vmatprep.mubr.f32.mxu0 0.0
    %2140 = vmatmul.mubr.f32.gmra.mrb[0].mxu0 %v2073
    %v2141 = vpop.f32.mrb[0].mxu0
    %v2142 = vadd.f32 %v2067, %v2141
    %v2143 = vpop.f32.mrb[0].mxu0
    %2144 = vdwg.mxu0
    %vm2145 = vcmask 1024
    %2146 = vst.msk [vmem:[%s10] sm:$0x3] %vm2145, %v2142
    // Predicated region
    $region50: #{tpu_custom_call.1} parent=1 // pred_check
      _
    $region51: #{tpu_custom_call.1} parent=1 // pred_check_branch
      %2148 = sbr.rel (0) target = $region53
    $region52: #{tpu_custom_call.1} parent=1 // pred_region
      _
    $region53: #{tpu_custom_call.1} parent=1 // pred_fallthru
      _
    // Predicated region
    $region54: #{tpu_custom_call.1} parent=1 // pred_check
      _
    $region55: #{tpu_custom_call.1} parent=1 // pred_check_branch
      %2150 = sbr.rel (0) target = $region57
    $region56: #{tpu_custom_call.1} parent=1 // pred_region
      _
    $region57: #{tpu_custom_call.1} parent=1 // pred_fallthru
      _
    %2151 = vsyncpa [#allocation4], 1
    %2152 = vsyncpa [#allocation6], 1

</llo_original>
